<compile_context>
chip_gen: v5e
topology: v5e:2x2
jax: 0.10.0
libtpu: 0.0.40
codegen_flags: <defaults>
</compile_context>

<pallas_src>
import jax
import jax.numpy as jnp
from jax.experimental import pallas as pl
from jax.experimental.pallas import tpu as pltpu


def _pos_embed_kernel(col_t_ref, row_t_ref, out_ref):
    """col_t_ref: (F, W)    = col_embed(arange(W)).T
       row_t_ref: (F, H)    = row_embed(arange(H)).T
       out_ref:   (2F, H*W) channel-first, row-major flattened spatial map:
                    out[c, h*W + w] = col[c, w]      for c <  F   (x half)
                    out[c, h*W + w] = row[c - F, h]  for c >= F   (y half)
    """
    F, W = col_t_ref.shape
    _, H = row_t_ref.shape

    col_t = col_t_ref[...]   # (F, W)
    row_t = row_t_ref[...]   # (F, H)

    # x half: col embedding replicated across the H rows -> one full-width,
    # unmasked slab store (no per-row masked stores).
    out_ref[:F, :] = jnp.broadcast_to(col_t[:, None, :], (F, H, W)).reshape(F, H * W)
    # y half: row embedding replicated across the W cols -> one slab store.
    out_ref[F:, :] = jnp.broadcast_to(row_t[:, :, None], (F, H, W)).reshape(F, H * W)


def position_embedding_learned(x, row_weight, col_weight):
    """x: (B, C, H, W) NCHW (only its shape is used, like the PyTorch module).
       row_weight/col_weight: (50, F) learned embedding tables (same dtype).
       Returns pos: (B, 2F, H, W), matching the PyTorch forward exactly."""
    B, _, H, W = x.shape
    F = row_weight.shape[1]
    assert row_weight.dtype == col_weight.dtype, "embedding tables must share a dtype"

    # Embedding lookup with arange(W)/arange(H) indices == leading-row slice,
    # transposed so the kernel inputs are channel-major (tiny, ~KB arrays).
    col_t = col_weight[:W].T   # (F, W)
    row_t = row_weight[:H].T   # (F, H)

    # Single (unbatched) kernel invocation; whole arrays live in VMEM.
    pos_flat = pl.pallas_call(
        _pos_embed_kernel,
        out_shape=jax.ShapeDtypeStruct((2 * F, H * W), row_weight.dtype),
        in_specs=[
            pl.BlockSpec(memory_space=pltpu.MemorySpace.VMEM),
            pl.BlockSpec(memory_space=pltpu.MemorySpace.VMEM),
        ],
        out_specs=pl.BlockSpec(memory_space=pltpu.MemorySpace.VMEM),
    )(col_t, row_t)

    # Row-major split of the flattened spatial axis -> (2F, H, W); metadata-only.
    pos = pos_flat.reshape(2 * F, H, W)
    # Batch replication deferred to XLA (fuses with downstream `x + pos`);
    # the kernel writes exactly one copy of the map to HBM.
    return jnp.broadcast_to(pos[None], (B, 2 * F, H, W))


if __name__ == "__main__":
    key = jax.random.PRNGKey(0)
    k_row, k_col, k_x = jax.random.split(key, 3)

    num_pos_feats = 32
    B, C, H, W = 2, 4, 16, 16

    # nn.init.uniform_ default range is [0, 1)
    row_weight = jax.random.uniform(k_row, (50, num_pos_feats), dtype=jnp.float32)
    col_weight = jax.random.uniform(k_col, (50, num_pos_feats), dtype=jnp.float32)
    x = jax.random.normal(k_x, (B, C, H, W), dtype=jnp.float32)

    pos = position_embedding_learned(x, row_weight, col_weight)
    pos = jax.block_until_ready(pos)

    # Pure-JAX reference check of the PyTorch forward semantics.
    x_emb = col_weight[:W]   # (W, F)
    y_emb = row_weight[:H]   # (H, F)
    ref = jnp.concatenate(
        [jnp.broadcast_to(x_emb[None, :, :], (H, W, num_pos_feats)),
         jnp.broadcast_to(y_emb[:, None, :], (H, W, num_pos_feats))],
        axis=-1,
    )
    ref = jnp.broadcast_to(jnp.transpose(ref, (2, 0, 1))[None],
                           (B, 2 * num_pos_feats, H, W))

    assert pos.shape == (B, 2 * num_pos_feats, H, W)
    assert pos.dtype == jnp.float32
    assert jnp.allclose(pos, ref)
    print("KERNEL_OK")
</pallas_src>

<mosaic_0001>
module attributes {stable_mosaic.version = 11 : i64} {
  func.func @_pos_embed_kernel(%arg0: memref<32x16xf32, #tpu.memory_space<vmem>>, %arg1: memref<32x16xf32, #tpu.memory_space<vmem>>, %arg2: memref<64x256xf32, #tpu.memory_space<vmem>>) attributes {dimension_semantics = [], scalar_prefetch = 0 : i64, scratch_operands = 0 : i64, tpu.core_type = #tpu.core_type<tc>} {
    %c0 = arith.constant 0 : index
    %c0_0 = arith.constant 0 : index
    %0 = vector.load %arg0[%c0, %c0_0] : memref<32x16xf32, #tpu.memory_space<vmem>>, vector<32x16xf32>
    %c0_1 = arith.constant 0 : index
    %c0_2 = arith.constant 0 : index
    %1 = vector.load %arg1[%c0_1, %c0_2] : memref<32x16xf32, #tpu.memory_space<vmem>>, vector<32x16xf32>
    %2 = vector.shape_cast %0 : vector<32x16xf32> to vector<32x1x16xf32>
    %3 = vector.shape_cast %2 : vector<32x1x16xf32> to vector<32x1x16xf32>
    %4 = vector.broadcast %3 : vector<32x1x16xf32> to vector<32x16x16xf32>
    %5 = vector.shape_cast %4 : vector<32x16x16xf32> to vector<32x256xf32>
    %c0_3 = arith.constant 0 : index
    %c0_4 = arith.constant 0 : index
    %6 = vector.load %arg2[%c0_3, %c0_4] : memref<64x256xf32, #tpu.memory_space<vmem>>, vector<32x256xf32>
    tpu.vector_store %arg2[%c0_3, %c0_4], %5 {strides = array<i32>} : memref<64x256xf32, #tpu.memory_space<vmem>>, vector<32x256xf32>,
    %7 = vector.shape_cast %1 : vector<32x16xf32> to vector<32x16x1xf32>
    %8 = vector.shape_cast %7 : vector<32x16x1xf32> to vector<32x16x1xf32>
    %9 = vector.broadcast %8 : vector<32x16x1xf32> to vector<32x16x16xf32>
    %10 = vector.shape_cast %9 : vector<32x16x16xf32> to vector<32x256xf32>
    %c32 = arith.constant 32 : index
    %c0_5 = arith.constant 0 : index
    %11 = vector.load %arg2[%c32, %c0_5] : memref<64x256xf32, #tpu.memory_space<vmem>>, vector<32x256xf32>
    tpu.vector_store %arg2[%c32, %c0_5], %10 {strides = array<i32>} : memref<64x256xf32, #tpu.memory_space<vmem>>, vector<32x256xf32>,
    return
  }
}

</mosaic_0001>

<llo_original>
// kernel: tpu_custom_call.1
$region0: #{tpu_custom_call.1}
  #allocation0 [shape = 'u32[]', space=smem, size = 0x4, offset = 0x4, fixed_abs, tag = 'smem constant byte address 0x4 - core index']
  #allocation1 [shape = 'u32[72,128]{1,0:T(1,128)}', space=vmem, size = 0x9000, scoped, tag = 'internal scratch']
  %s0 = inlined_call_operand.vmem [shape: f32[32,16], index: 0, kind: input, shape index: {}]
  %s1 = inlined_call_operand.vmem [shape: f32[32,16], index: 1, kind: input, shape index: {}]
  %s2 = inlined_call_operand.hbm [shape: f32[64,256], index: 2, kind: output, shape index: {}]
  %s3 = sld [smem:[#allocation0]]
  $region18: #{tpu_custom_call.1} parent=0
    _
  %s5 = ssub.s32 1, %s3
  %s6 = scalar_select 0, %s5, %s3
  $region1: #{tpu_custom_call.1} parent=0
    #allocation2 [shape = 'u8[65536]{0}', space=vmem, size = 0x10000, scoped, tag = 'output window, operand 0, single buffered']
    #allocation3 [shape = 's32[1]{0}', space=sflag, size = 0x4, scoped, tag = 'scoped memory for tpu_custom_call.1']
    %7 = vsyncpa [#allocation3], 0
    // Predicated region
    $region2: #{tpu_custom_call.1} parent=1 // pred_check
      _
    $region3: #{tpu_custom_call.1} parent=1 // pred_check_branch
      %9 = sbr.rel (0) target = $region5
    $region4: #{tpu_custom_call.1} parent=1 // pred_region
      _
    $region5: #{tpu_custom_call.1} parent=1 // pred_fallthru
      _
    // Predicated region
    $region6: #{tpu_custom_call.1} parent=1 // pred_check
      _
    $region7: #{tpu_custom_call.1} parent=1 // pred_check_branch
      %11 = sbr.rel (0) target = $region9
    $region8: #{tpu_custom_call.1} parent=1 // pred_region
      _
    $region9: #{tpu_custom_call.1} parent=1 // pred_fallthru
      _
    %v12 = vld [vmem:[%s0] sm:$0xff]
    %v13 = vld [vmem:[%s0 + $0x8] sm:$0xff]
    %v14 = vld [vmem:[%s0 + $0x10] sm:$0xff]
    %v15 = vld [vmem:[%s0 + $0x18] sm:$0xff]
    %v16 = vld [vmem:[%s1] sm:$0xff]
    %v17 = vld [vmem:[%s1 + $0x8] sm:$0xff]
    %v18 = vld [vmem:[%s1 + $0x10] sm:$0xff]
    %v19 = vld [vmem:[%s1 + $0x18] sm:$0xff]
    %v24 = vrot.slane %v12, 1
    %v25 = vrot.slane %v12, 2
    %v26 = vrot.slane %v12, 3
    %v27 = vrot.slane %v12, 4
    %v28 = vrot.slane %v12, 5
    %v29 = vrot.slane %v12, 6
    %v30 = vrot.slane %v12, 7
    %v31 = vrot.slane %v13, 1
    %v32 = vrot.slane %v13, 2
    %v33 = vrot.slane %v13, 3
    %v34 = vrot.slane %v13, 4
    %v35 = vrot.slane %v13, 5
    %v36 = vrot.slane %v13, 6
    %v37 = vrot.slane %v13, 7
    %v38 = vrot.slane %v14, 1
    %v39 = vrot.slane %v14, 2
    %v40 = vrot.slane %v14, 3
    %v41 = vrot.slane %v14, 4
    %v42 = vrot.slane %v14, 5
    %v43 = vrot.slane %v14, 6
    %v44 = vrot.slane %v14, 7
    %v45 = vrot.slane %v15, 1
    %v46 = vrot.slane %v15, 2
    %v47 = vrot.slane %v15, 3
    %v48 = vrot.slane %v15, 4
    %v49 = vrot.slane %v15, 5
    %v50 = vrot.slane %v15, 6
    %v51 = vrot.slane %v15, 7
    %v52 = vperm.slane %v12, 0
    %v53 = vperm.slane %v24, 0
    %v54 = vperm.slane %v25, 0
    %v55 = vperm.slane %v26, 0
    %v56 = vperm.slane %v27, 0
    %v57 = vperm.slane %v28, 0
    %v58 = vperm.slane %v29, 0
    %v59 = vperm.slane %v30, 0
    %v60 = vperm.slane %v13, 0
    %v61 = vperm.slane %v31, 0
    %v62 = vperm.slane %v32, 0
    %v63 = vperm.slane %v33, 0
    %v64 = vperm.slane %v34, 0
    %v65 = vperm.slane %v35, 0
    %v66 = vperm.slane %v36, 0
    %v67 = vperm.slane %v37, 0
    %v68 = vperm.slane %v14, 0
    %v69 = vperm.slane %v38, 0
    %v70 = vperm.slane %v39, 0
    %v71 = vperm.slane %v40, 0
    %v72 = vperm.slane %v41, 0
    %v73 = vperm.slane %v42, 0
    %v74 = vperm.slane %v43, 0
    %v75 = vperm.slane %v44, 0
    %v76 = vperm.slane %v15, 0
    %v77 = vperm.slane %v45, 0
    %v78 = vperm.slane %v46, 0
    %v79 = vperm.slane %v47, 0
    %v80 = vperm.slane %v48, 0
    %v81 = vperm.slane %v49, 0
    %v82 = vperm.slane %v50, 0
    %v83 = vperm.slane %v51, 0
    %v116 = vrot.slane %v54, 4
    %vm117 = vcmask 1047556
    %v118 = vsel %vm117, %v116, %v52
    %v119 = vrot.slane %v52, 4
    %v120 = vsel %vm117, %v54, %v119
    %v122 = vunpack.c.l.s4 1983009808
    %v123 = vunpack.c.0.s8 %v122
    %v124 = vperm.slane %v118, %v123
    %v126 = vunpack.c.l.s4 1983009808
    %v127 = vunpack.c.0.s8 %v126
    %v128 = vperm.slane %v120, %v127
    %v129 = vrot.slane %v55, 4
    %v130 = vsel %vm117, %v129, %v53
    %v131 = vrot.slane %v53, 4
    %v132 = vsel %vm117, %v55, %v131
    %v134 = vunpack.c.l.s4 1983009808
    %v135 = vunpack.c.0.s8 %v134
    %v136 = vperm.slane %v130, %v135
    %v138 = vunpack.c.l.s4 1983009808
    %v139 = vunpack.c.0.s8 %v138
    %v140 = vperm.slane %v132, %v139
    %v141 = vrot.slane %v58, 4
    %v142 = vsel %vm117, %v141, %v56
    %v143 = vrot.slane %v56, 4
    %v144 = vsel %vm117, %v58, %v143
    %v146 = vunpack.c.l.s4 1983009808
    %v147 = vunpack.c.0.s8 %v146
    %v148 = vperm.slane %v142, %v147
    %v150 = vunpack.c.l.s4 1983009808
    %v151 = vunpack.c.0.s8 %v150
    %v152 = vperm.slane %v144, %v151
    %v153 = vrot.slane %v59, 4
    %v154 = vsel %vm117, %v153, %v57
    %v155 = vrot.slane %v57, 4
    %v156 = vsel %vm117, %v59, %v155
    %v158 = vunpack.c.l.s4 1983009808
    %v159 = vunpack.c.0.s8 %v158
    %v160 = vperm.slane %v154, %v159
    %v162 = vunpack.c.l.s4 1983009808
    %v163 = vunpack.c.0.s8 %v162
    %v164 = vperm.slane %v156, %v163
    %v165 = vrot.slane %v136, 4
    %v166 = vsel %vm117, %v165, %v124
    %v167 = vrot.slane %v124, 4
    %v168 = vsel %vm117, %v136, %v167
    %v170 = vunpack.c.l.s4 1934713408
    %v171 = vunpack.c.0.s8 %v170
    %v172 = vperm.slane %v166, %v171
    %v174 = vunpack.c.l.s4 1934713408
    %v175 = vunpack.c.0.s8 %v174
    %v176 = vperm.slane %v168, %v175
    %v177 = vrot.slane %v140, 4
    %v178 = vsel %vm117, %v177, %v128
    %v179 = vrot.slane %v128, 4
    %v180 = vsel %vm117, %v140, %v179
    %v182 = vunpack.c.l.s4 1934713408
    %v183 = vunpack.c.0.s8 %v182
    %v184 = vperm.slane %v178, %v183
    %v186 = vunpack.c.l.s4 1934713408
    %v187 = vunpack.c.0.s8 %v186
    %v188 = vperm.slane %v180, %v187
    %v189 = vrot.slane %v160, 4
    %v190 = vsel %vm117, %v189, %v148
    %v191 = vrot.slane %v148, 4
    %v192 = vsel %vm117, %v160, %v191
    %v194 = vunpack.c.l.s4 1934713408
    %v195 = vunpack.c.0.s8 %v194
    %v196 = vperm.slane %v190, %v195
    %v198 = vunpack.c.l.s4 1934713408
    %v199 = vunpack.c.0.s8 %v198
    %v200 = vperm.slane %v192, %v199
    %v201 = vrot.slane %v164, 4
    %v202 = vsel %vm117, %v201, %v152
    %v203 = vrot.slane %v152, 4
    %v204 = vsel %vm117, %v164, %v203
    %v206 = vunpack.c.l.s4 1934713408
    %v207 = vunpack.c.0.s8 %v206
    %v208 = vperm.slane %v202, %v207
    %v210 = vunpack.c.l.s4 1934713408
    %v211 = vunpack.c.0.s8 %v210
    %v212 = vperm.slane %v204, %v211
    %v213 = vrot.slane %v196, 4
    %v214 = vsel %vm117, %v213, %v172
    %v215 = vrot.slane %v172, 4
    %v216 = vsel %vm117, %v196, %v215
    %v217 = vrot.slane %v200, 4
    %v218 = vsel %vm117, %v217, %v176
    %v219 = vrot.slane %v176, 4
    %v220 = vsel %vm117, %v200, %v219
    %v221 = vrot.slane %v208, 4
    %v222 = vsel %vm117, %v221, %v184
    %v223 = vrot.slane %v184, 4
    %v224 = vsel %vm117, %v208, %v223
    %v225 = vrot.slane %v212, 4
    %v226 = vsel %vm117, %v225, %v188
    %v227 = vrot.slane %v188, 4
    %v228 = vsel %vm117, %v212, %v227
    %v229 = vrot.slane %v62, 4
    %v230 = vsel %vm117, %v229, %v60
    %v231 = vrot.slane %v60, 4
    %v232 = vsel %vm117, %v62, %v231
    %v234 = vunpack.c.l.s4 1983009808
    %v235 = vunpack.c.0.s8 %v234
    %v236 = vperm.slane %v230, %v235
    %v238 = vunpack.c.l.s4 1983009808
    %v239 = vunpack.c.0.s8 %v238
    %v240 = vperm.slane %v232, %v239
    %v241 = vrot.slane %v63, 4
    %v242 = vsel %vm117, %v241, %v61
    %v243 = vrot.slane %v61, 4
    %v244 = vsel %vm117, %v63, %v243
    %v246 = vunpack.c.l.s4 1983009808
    %v247 = vunpack.c.0.s8 %v246
    %v248 = vperm.slane %v242, %v247
    %v250 = vunpack.c.l.s4 1983009808
    %v251 = vunpack.c.0.s8 %v250
    %v252 = vperm.slane %v244, %v251
    %v253 = vrot.slane %v66, 4
    %v254 = vsel %vm117, %v253, %v64
    %v255 = vrot.slane %v64, 4
    %v256 = vsel %vm117, %v66, %v255
    %v258 = vunpack.c.l.s4 1983009808
    %v259 = vunpack.c.0.s8 %v258
    %v260 = vperm.slane %v254, %v259
    %v262 = vunpack.c.l.s4 1983009808
    %v263 = vunpack.c.0.s8 %v262
    %v264 = vperm.slane %v256, %v263
    %v265 = vrot.slane %v67, 4
    %v266 = vsel %vm117, %v265, %v65
    %v267 = vrot.slane %v65, 4
    %v268 = vsel %vm117, %v67, %v267
    %v270 = vunpack.c.l.s4 1983009808
    %v271 = vunpack.c.0.s8 %v270
    %v272 = vperm.slane %v266, %v271
    %v274 = vunpack.c.l.s4 1983009808
    %v275 = vunpack.c.0.s8 %v274
    %v276 = vperm.slane %v268, %v275
    %v277 = vrot.slane %v248, 4
    %v278 = vsel %vm117, %v277, %v236
    %v279 = vrot.slane %v236, 4
    %v280 = vsel %vm117, %v248, %v279
    %v282 = vunpack.c.l.s4 1934713408
    %v283 = vunpack.c.0.s8 %v282
    %v284 = vperm.slane %v278, %v283
    %v286 = vunpack.c.l.s4 1934713408
    %v287 = vunpack.c.0.s8 %v286
    %v288 = vperm.slane %v280, %v287
    %v289 = vrot.slane %v252, 4
    %v290 = vsel %vm117, %v289, %v240
    %v291 = vrot.slane %v240, 4
    %v292 = vsel %vm117, %v252, %v291
    %v294 = vunpack.c.l.s4 1934713408
    %v295 = vunpack.c.0.s8 %v294
    %v296 = vperm.slane %v290, %v295
    %v298 = vunpack.c.l.s4 1934713408
    %v299 = vunpack.c.0.s8 %v298
    %v300 = vperm.slane %v292, %v299
    %v301 = vrot.slane %v272, 4
    %v302 = vsel %vm117, %v301, %v260
    %v303 = vrot.slane %v260, 4
    %v304 = vsel %vm117, %v272, %v303
    %v306 = vunpack.c.l.s4 1934713408
    %v307 = vunpack.c.0.s8 %v306
    %v308 = vperm.slane %v302, %v307
    %v310 = vunpack.c.l.s4 1934713408
    %v311 = vunpack.c.0.s8 %v310
    %v312 = vperm.slane %v304, %v311
    %v313 = vrot.slane %v276, 4
    %v314 = vsel %vm117, %v313, %v264
    %v315 = vrot.slane %v264, 4
    %v316 = vsel %vm117, %v276, %v315
    %v318 = vunpack.c.l.s4 1934713408
    %v319 = vunpack.c.0.s8 %v318
    %v320 = vperm.slane %v314, %v319
    %v322 = vunpack.c.l.s4 1934713408
    %v323 = vunpack.c.0.s8 %v322
    %v324 = vperm.slane %v316, %v323
    %v325 = vrot.slane %v308, 4
    %v326 = vsel %vm117, %v325, %v284
    %v327 = vrot.slane %v284, 4
    %v328 = vsel %vm117, %v308, %v327
    %v329 = vrot.slane %v312, 4
    %v330 = vsel %vm117, %v329, %v288
    %v331 = vrot.slane %v288, 4
    %v332 = vsel %vm117, %v312, %v331
    %v333 = vrot.slane %v320, 4
    %v334 = vsel %vm117, %v333, %v296
    %v335 = vrot.slane %v296, 4
    %v336 = vsel %vm117, %v320, %v335
    %v337 = vrot.slane %v324, 4
    %v338 = vsel %vm117, %v337, %v300
    %v339 = vrot.slane %v300, 4
    %v340 = vsel %vm117, %v324, %v339
    %v341 = vrot.slane %v70, 4
    %v342 = vsel %vm117, %v341, %v68
    %v343 = vrot.slane %v68, 4
    %v344 = vsel %vm117, %v70, %v343
    %v346 = vunpack.c.l.s4 1983009808
    %v347 = vunpack.c.0.s8 %v346
    %v348 = vperm.slane %v342, %v347
    %v350 = vunpack.c.l.s4 1983009808
    %v351 = vunpack.c.0.s8 %v350
    %v352 = vperm.slane %v344, %v351
    %v353 = vrot.slane %v71, 4
    %v354 = vsel %vm117, %v353, %v69
    %v355 = vrot.slane %v69, 4
    %v356 = vsel %vm117, %v71, %v355
    %v358 = vunpack.c.l.s4 1983009808
    %v359 = vunpack.c.0.s8 %v358
    %v360 = vperm.slane %v354, %v359
    %v362 = vunpack.c.l.s4 1983009808
    %v363 = vunpack.c.0.s8 %v362
    %v364 = vperm.slane %v356, %v363
    %v365 = vrot.slane %v74, 4
    %v366 = vsel %vm117, %v365, %v72
    %v367 = vrot.slane %v72, 4
    %v368 = vsel %vm117, %v74, %v367
    %v370 = vunpack.c.l.s4 1983009808
    %v371 = vunpack.c.0.s8 %v370
    %v372 = vperm.slane %v366, %v371
    %v374 = vunpack.c.l.s4 1983009808
    %v375 = vunpack.c.0.s8 %v374
    %v376 = vperm.slane %v368, %v375
    %v377 = vrot.slane %v75, 4
    %v378 = vsel %vm117, %v377, %v73
    %v379 = vrot.slane %v73, 4
    %v380 = vsel %vm117, %v75, %v379
    %v382 = vunpack.c.l.s4 1983009808
    %v383 = vunpack.c.0.s8 %v382
    %v384 = vperm.slane %v378, %v383
    %v386 = vunpack.c.l.s4 1983009808
    %v387 = vunpack.c.0.s8 %v386
    %v388 = vperm.slane %v380, %v387
    %v389 = vrot.slane %v360, 4
    %v390 = vsel %vm117, %v389, %v348
    %v391 = vrot.slane %v348, 4
    %v392 = vsel %vm117, %v360, %v391
    %v394 = vunpack.c.l.s4 1934713408
    %v395 = vunpack.c.0.s8 %v394
    %v396 = vperm.slane %v390, %v395
    %v398 = vunpack.c.l.s4 1934713408
    %v399 = vunpack.c.0.s8 %v398
    %v400 = vperm.slane %v392, %v399
    %v401 = vrot.slane %v364, 4
    %v402 = vsel %vm117, %v401, %v352
    %v403 = vrot.slane %v352, 4
    %v404 = vsel %vm117, %v364, %v403
    %v406 = vunpack.c.l.s4 1934713408
    %v407 = vunpack.c.0.s8 %v406
    %v408 = vperm.slane %v402, %v407
    %v410 = vunpack.c.l.s4 1934713408
    %v411 = vunpack.c.0.s8 %v410
    %v412 = vperm.slane %v404, %v411
    %v413 = vrot.slane %v384, 4
    %v414 = vsel %vm117, %v413, %v372
    %v415 = vrot.slane %v372, 4
    %v416 = vsel %vm117, %v384, %v415
    %v418 = vunpack.c.l.s4 1934713408
    %v419 = vunpack.c.0.s8 %v418
    %v420 = vperm.slane %v414, %v419
    %v422 = vunpack.c.l.s4 1934713408
    %v423 = vunpack.c.0.s8 %v422
    %v424 = vperm.slane %v416, %v423
    %v425 = vrot.slane %v388, 4
    %v426 = vsel %vm117, %v425, %v376
    %v427 = vrot.slane %v376, 4
    %v428 = vsel %vm117, %v388, %v427
    %v430 = vunpack.c.l.s4 1934713408
    %v431 = vunpack.c.0.s8 %v430
    %v432 = vperm.slane %v426, %v431
    %v434 = vunpack.c.l.s4 1934713408
    %v435 = vunpack.c.0.s8 %v434
    %v436 = vperm.slane %v428, %v435
    %v437 = vrot.slane %v420, 4
    %v438 = vsel %vm117, %v437, %v396
    %v439 = vrot.slane %v396, 4
    %v440 = vsel %vm117, %v420, %v439
    %v441 = vrot.slane %v424, 4
    %v442 = vsel %vm117, %v441, %v400
    %v443 = vrot.slane %v400, 4
    %v444 = vsel %vm117, %v424, %v443
    %v445 = vrot.slane %v432, 4
    %v446 = vsel %vm117, %v445, %v408
    %v447 = vrot.slane %v408, 4
    %v448 = vsel %vm117, %v432, %v447
    %v449 = vrot.slane %v436, 4
    %v450 = vsel %vm117, %v449, %v412
    %v451 = vrot.slane %v412, 4
    %v452 = vsel %vm117, %v436, %v451
    %v453 = vrot.slane %v78, 4
    %v454 = vsel %vm117, %v453, %v76
    %v455 = vrot.slane %v76, 4
    %v456 = vsel %vm117, %v78, %v455
    %v458 = vunpack.c.l.s4 1983009808
    %v459 = vunpack.c.0.s8 %v458
    %v460 = vperm.slane %v454, %v459
    %v462 = vunpack.c.l.s4 1983009808
    %v463 = vunpack.c.0.s8 %v462
    %v464 = vperm.slane %v456, %v463
    %v465 = vrot.slane %v79, 4
    %v466 = vsel %vm117, %v465, %v77
    %v467 = vrot.slane %v77, 4
    %v468 = vsel %vm117, %v79, %v467
    %v470 = vunpack.c.l.s4 1983009808
    %v471 = vunpack.c.0.s8 %v470
    %v472 = vperm.slane %v466, %v471
    %v474 = vunpack.c.l.s4 1983009808
    %v475 = vunpack.c.0.s8 %v474
    %v476 = vperm.slane %v468, %v475
    %v477 = vrot.slane %v82, 4
    %v478 = vsel %vm117, %v477, %v80
    %v479 = vrot.slane %v80, 4
    %v480 = vsel %vm117, %v82, %v479
    %v482 = vunpack.c.l.s4 1983009808
    %v483 = vunpack.c.0.s8 %v482
    %v484 = vperm.slane %v478, %v483
    %v486 = vunpack.c.l.s4 1983009808
    %v487 = vunpack.c.0.s8 %v486
    %v488 = vperm.slane %v480, %v487
    %v489 = vrot.slane %v83, 4
    %v490 = vsel %vm117, %v489, %v81
    %v491 = vrot.slane %v81, 4
    %v492 = vsel %vm117, %v83, %v491
    %v494 = vunpack.c.l.s4 1983009808
    %v495 = vunpack.c.0.s8 %v494
    %v496 = vperm.slane %v490, %v495
    %v498 = vunpack.c.l.s4 1983009808
    %v499 = vunpack.c.0.s8 %v498
    %v500 = vperm.slane %v492, %v499
    %v501 = vrot.slane %v472, 4
    %v502 = vsel %vm117, %v501, %v460
    %v503 = vrot.slane %v460, 4
    %v504 = vsel %vm117, %v472, %v503
    %v506 = vunpack.c.l.s4 1934713408
    %v507 = vunpack.c.0.s8 %v506
    %v508 = vperm.slane %v502, %v507
    %v510 = vunpack.c.l.s4 1934713408
    %v511 = vunpack.c.0.s8 %v510
    %v512 = vperm.slane %v504, %v511
    %v513 = vrot.slane %v476, 4
    %v514 = vsel %vm117, %v513, %v464
    %v515 = vrot.slane %v464, 4
    %v516 = vsel %vm117, %v476, %v515
    %v518 = vunpack.c.l.s4 1934713408
    %v519 = vunpack.c.0.s8 %v518
    %v520 = vperm.slane %v514, %v519
    %v522 = vunpack.c.l.s4 1934713408
    %v523 = vunpack.c.0.s8 %v522
    %v524 = vperm.slane %v516, %v523
    %v525 = vrot.slane %v496, 4
    %v526 = vsel %vm117, %v525, %v484
    %v527 = vrot.slane %v484, 4
    %v528 = vsel %vm117, %v496, %v527
    %v530 = vunpack.c.l.s4 1934713408
    %v531 = vunpack.c.0.s8 %v530
    %v532 = vperm.slane %v526, %v531
    %v534 = vunpack.c.l.s4 1934713408
    %v535 = vunpack.c.0.s8 %v534
    %v536 = vperm.slane %v528, %v535
    %v537 = vrot.slane %v500, 4
    %v538 = vsel %vm117, %v537, %v488
    %v539 = vrot.slane %v488, 4
    %v540 = vsel %vm117, %v500, %v539
    %v542 = vunpack.c.l.s4 1934713408
    %v543 = vunpack.c.0.s8 %v542
    %v544 = vperm.slane %v538, %v543
    %v546 = vunpack.c.l.s4 1934713408
    %v547 = vunpack.c.0.s8 %v546
    %v548 = vperm.slane %v540, %v547
    %v549 = vrot.slane %v532, 4
    %v550 = vsel %vm117, %v549, %v508
    %v551 = vrot.slane %v508, 4
    %v552 = vsel %vm117, %v532, %v551
    %v553 = vrot.slane %v536, 4
    %v554 = vsel %vm117, %v553, %v512
    %v555 = vrot.slane %v512, 4
    %v556 = vsel %vm117, %v536, %v555
    %v557 = vrot.slane %v544, 4
    %v558 = vsel %vm117, %v557, %v520
    %v559 = vrot.slane %v520, 4
    %v560 = vsel %vm117, %v544, %v559
    %v561 = vrot.slane %v548, 4
    %v562 = vsel %vm117, %v561, %v524
    %v563 = vrot.slane %v524, 4
    %v564 = vsel %vm117, %v548, %v563
    %569 = vrot.lane.b32.xlu0 %v216, 16
    %v570 = vpop.permute.xlu0 %569
    %571 = vrot.lane.b32.xlu0 %v328, 16
    %v572 = vpop.permute.xlu0 %571
    %573 = vrot.lane.b32.xlu0 %v440, 16
    %v574 = vpop.permute.xlu0 %573
    %575 = vrot.lane.b32.xlu0 %v552, 16
    %v576 = vpop.permute.xlu0 %575
    %585 = vrot.lane.b32.xlu0 %v218, 32
    %v586 = vpop.permute.xlu0 %585
    %587 = vrot.lane.b32.xlu0 %v330, 32
    %v588 = vpop.permute.xlu0 %587
    %589 = vrot.lane.b32.xlu0 %v442, 32
    %v590 = vpop.permute.xlu0 %589
    %591 = vrot.lane.b32.xlu0 %v554, 32
    %v592 = vpop.permute.xlu0 %591
    %601 = vrot.lane.b32.xlu0 %v220, 48
    %v602 = vpop.permute.xlu0 %601
    %603 = vrot.lane.b32.xlu0 %v332, 48
    %v604 = vpop.permute.xlu0 %603
    %605 = vrot.lane.b32.xlu0 %v444, 48
    %v606 = vpop.permute.xlu0 %605
    %607 = vrot.lane.b32.xlu0 %v556, 48
    %v608 = vpop.permute.xlu0 %607
    %617 = vrot.lane.b32.xlu0 %v222, 64
    %v618 = vpop.permute.xlu0 %617
    %619 = vrot.lane.b32.xlu0 %v334, 64
    %v620 = vpop.permute.xlu0 %619
    %621 = vrot.lane.b32.xlu0 %v446, 64
    %v622 = vpop.permute.xlu0 %621
    %623 = vrot.lane.b32.xlu0 %v558, 64
    %v624 = vpop.permute.xlu0 %623
    %633 = vrot.lane.b32.xlu0 %v224, 80
    %v634 = vpop.permute.xlu0 %633
    %635 = vrot.lane.b32.xlu0 %v336, 80
    %v636 = vpop.permute.xlu0 %635
    %637 = vrot.lane.b32.xlu0 %v448, 80
    %v638 = vpop.permute.xlu0 %637
    %639 = vrot.lane.b32.xlu0 %v560, 80
    %v640 = vpop.permute.xlu0 %639
    %649 = vrot.lane.b32.xlu0 %v226, 96
    %v650 = vpop.permute.xlu0 %649
    %651 = vrot.lane.b32.xlu0 %v338, 96
    %v652 = vpop.permute.xlu0 %651
    %653 = vrot.lane.b32.xlu0 %v450, 96
    %v654 = vpop.permute.xlu0 %653
    %655 = vrot.lane.b32.xlu0 %v562, 96
    %v656 = vpop.permute.xlu0 %655
    %665 = vrot.lane.b32.xlu0 %v228, 112
    %v666 = vpop.permute.xlu0 %665
    %667 = vrot.lane.b32.xlu0 %v340, 112
    %v668 = vpop.permute.xlu0 %667
    %669 = vrot.lane.b32.xlu0 %v452, 112
    %v670 = vpop.permute.xlu0 %669
    %671 = vrot.lane.b32.xlu0 %v564, 112
    %v672 = vpop.permute.xlu0 %671
    %vm677 = vcmask 130048
    %v678 = vsel %vm677, %v214, %v570
    %v679 = vsel %vm677, %v326, %v572
    %v680 = vsel %vm677, %v438, %v574
    %v681 = vsel %vm677, %v550, %v576
    %vm682 = vcmask 261120
    %v683 = vsel %vm682, %v678, %v586
    %v684 = vsel %vm682, %v679, %v588
    %v685 = vsel %vm682, %v680, %v590
    %v686 = vsel %vm682, %v681, %v592
    %vm687 = vcmask 392192
    %v688 = vsel %vm687, %v683, %v602
    %v689 = vsel %vm687, %v684, %v604
    %v690 = vsel %vm687, %v685, %v606
    %v691 = vsel %vm687, %v686, %v608
    %vm692 = vcmask 523264
    %v693 = vsel %vm692, %v688, %v618
    %v694 = vsel %vm692, %v689, %v620
    %v695 = vsel %vm692, %v690, %v622
    %v696 = vsel %vm692, %v691, %v624
    %vm697 = vcmask 654336
    %v698 = vsel %vm697, %v693, %v634
    %v699 = vsel %vm697, %v694, %v636
    %v700 = vsel %vm697, %v695, %v638
    %v701 = vsel %vm697, %v696, %v640
    %vm702 = vcmask 785408
    %v703 = vsel %vm702, %v698, %v650
    %v704 = vsel %vm702, %v699, %v652
    %v705 = vsel %vm702, %v700, %v654
    %v706 = vsel %vm702, %v701, %v656
    %vm707 = vcmask 916480
    %v708 = vsel %vm707, %v703, %v666
    %v709 = vsel %vm707, %v704, %v668
    %v710 = vsel %vm707, %v705, %v670
    %v711 = vsel %vm707, %v706, %v672
    %712 = vst [vmem:[#allocation2] sm:$0xff] %v708
    %713 = vst [vmem:[#allocation2 + $0x8] sm:$0xff] %v708
    %714 = vst [vmem:[#allocation2 + $0x10] sm:$0xff] %v709
    %715 = vst [vmem:[#allocation2 + $0x18] sm:$0xff] %v709
    %716 = vst [vmem:[#allocation2 + $0x20] sm:$0xff] %v710
    %717 = vst [vmem:[#allocation2 + $0x28] sm:$0xff] %v710
    %718 = vst [vmem:[#allocation2 + $0x30] sm:$0xff] %v711
    %719 = vst [vmem:[#allocation2 + $0x38] sm:$0xff] %v711
    %v720 = vperm.slane %v16, 0
    %v721 = vlaneseq
    %v722 = vshrl.u32 %v721, 7
    %724 = vset.pattern.permute.xlu0 %v722
    %725 = vperm.xlu0 %724, %v720
    %v726 = vpop.permute.xlu0 %725
    %v727 = vlaneseq
    %v728 = vshrl.u32 %v727, 7
    %v729 = vadd.s32 %v728, 8
    %730 = vset.pattern.permute.xlu0 %v729
    %731 = vperm.xlu0 %730, %v720
    %v732 = vpop.permute.xlu0 %731
    %v733 = vperm.slane %v16, 1
    %v734 = vlaneseq
    %v735 = vshrl.u32 %v734, 7
    %737 = vset.pattern.permute.xlu0 %v735
    %738 = vperm.xlu0 %737, %v733
    %v739 = vpop.permute.xlu0 %738
    %v740 = vlaneseq
    %v741 = vshrl.u32 %v740, 7
    %v742 = vadd.s32 %v741, 8
    %743 = vset.pattern.permute.xlu0 %v742
    %744 = vperm.xlu0 %743, %v733
    %v745 = vpop.permute.xlu0 %744
    %v746 = vperm.slane %v16, 2
    %v747 = vlaneseq
    %v748 = vshrl.u32 %v747, 7
    %750 = vset.pattern.permute.xlu0 %v748
    %751 = vperm.xlu0 %750, %v746
    %v752 = vpop.permute.xlu0 %751
    %v753 = vlaneseq
    %v754 = vshrl.u32 %v753, 7
    %v755 = vadd.s32 %v754, 8
    %756 = vset.pattern.permute.xlu0 %v755
    %757 = vperm.xlu0 %756, %v746
    %v758 = vpop.permute.xlu0 %757
    %v759 = vperm.slane %v16, 3
    %v760 = vlaneseq
    %v761 = vshrl.u32 %v760, 7
    %763 = vset.pattern.permute.xlu0 %v761
    %764 = vperm.xlu0 %763, %v759
    %v765 = vpop.permute.xlu0 %764
    %v766 = vlaneseq
    %v767 = vshrl.u32 %v766, 7
    %v768 = vadd.s32 %v767, 8
    %769 = vset.pattern.permute.xlu0 %v768
    %770 = vperm.xlu0 %769, %v759
    %v771 = vpop.permute.xlu0 %770
    %v772 = vperm.slane %v16, 4
    %v773 = vlaneseq
    %v774 = vshrl.u32 %v773, 7
    %776 = vset.pattern.permute.xlu0 %v774
    %777 = vperm.xlu0 %776, %v772
    %v778 = vpop.permute.xlu0 %777
    %v779 = vlaneseq
    %v780 = vshrl.u32 %v779, 7
    %v781 = vadd.s32 %v780, 8
    %782 = vset.pattern.permute.xlu0 %v781
    %783 = vperm.xlu0 %782, %v772
    %v784 = vpop.permute.xlu0 %783
    %v785 = vperm.slane %v16, 5
    %v786 = vlaneseq
    %v787 = vshrl.u32 %v786, 7
    %789 = vset.pattern.permute.xlu0 %v787
    %790 = vperm.xlu0 %789, %v785
    %v791 = vpop.permute.xlu0 %790
    %v792 = vlaneseq
    %v793 = vshrl.u32 %v792, 7
    %v794 = vadd.s32 %v793, 8
    %795 = vset.pattern.permute.xlu0 %v794
    %796 = vperm.xlu0 %795, %v785
    %v797 = vpop.permute.xlu0 %796
    %v798 = vperm.slane %v16, 6
    %v799 = vlaneseq
    %v800 = vshrl.u32 %v799, 7
    %802 = vset.pattern.permute.xlu0 %v800
    %803 = vperm.xlu0 %802, %v798
    %v804 = vpop.permute.xlu0 %803
    %v805 = vlaneseq
    %v806 = vshrl.u32 %v805, 7
    %v807 = vadd.s32 %v806, 8
    %808 = vset.pattern.permute.xlu0 %v807
    %809 = vperm.xlu0 %808, %v798
    %v810 = vpop.permute.xlu0 %809
    %v811 = vperm.slane %v16, 7
    %v812 = vlaneseq
    %v813 = vshrl.u32 %v812, 7
    %815 = vset.pattern.permute.xlu0 %v813
    %816 = vperm.xlu0 %815, %v811
    %v817 = vpop.permute.xlu0 %816
    %v818 = vlaneseq
    %v819 = vshrl.u32 %v818, 7
    %v820 = vadd.s32 %v819, 8
    %821 = vset.pattern.permute.xlu0 %v820
    %822 = vperm.xlu0 %821, %v811
    %v823 = vpop.permute.xlu0 %822
    %v824 = vperm.slane %v17, 0
    %v825 = vlaneseq
    %v826 = vshrl.u32 %v825, 7
    %828 = vset.pattern.permute.xlu0 %v826
    %829 = vperm.xlu0 %828, %v824
    %v830 = vpop.permute.xlu0 %829
    %v831 = vlaneseq
    %v832 = vshrl.u32 %v831, 7
    %v833 = vadd.s32 %v832, 8
    %834 = vset.pattern.permute.xlu0 %v833
    %835 = vperm.xlu0 %834, %v824
    %v836 = vpop.permute.xlu0 %835
    %v837 = vperm.slane %v17, 1
    %v838 = vlaneseq
    %v839 = vshrl.u32 %v838, 7
    %841 = vset.pattern.permute.xlu0 %v839
    %842 = vperm.xlu0 %841, %v837
    %v843 = vpop.permute.xlu0 %842
    %v844 = vlaneseq
    %v845 = vshrl.u32 %v844, 7
    %v846 = vadd.s32 %v845, 8
    %847 = vset.pattern.permute.xlu0 %v846
    %848 = vperm.xlu0 %847, %v837
    %v849 = vpop.permute.xlu0 %848
    %v850 = vperm.slane %v17, 2
    %v851 = vlaneseq
    %v852 = vshrl.u32 %v851, 7
    %854 = vset.pattern.permute.xlu0 %v852
    %855 = vperm.xlu0 %854, %v850
    %v856 = vpop.permute.xlu0 %855
    %v857 = vlaneseq
    %v858 = vshrl.u32 %v857, 7
    %v859 = vadd.s32 %v858, 8
    %860 = vset.pattern.permute.xlu0 %v859
    %861 = vperm.xlu0 %860, %v850
    %v862 = vpop.permute.xlu0 %861
    %v863 = vperm.slane %v17, 3
    %v864 = vlaneseq
    %v865 = vshrl.u32 %v864, 7
    %867 = vset.pattern.permute.xlu0 %v865
    %868 = vperm.xlu0 %867, %v863
    %v869 = vpop.permute.xlu0 %868
    %v870 = vlaneseq
    %v871 = vshrl.u32 %v870, 7
    %v872 = vadd.s32 %v871, 8
    %873 = vset.pattern.permute.xlu0 %v872
    %874 = vperm.xlu0 %873, %v863
    %v875 = vpop.permute.xlu0 %874
    %v876 = vperm.slane %v17, 4
    %v877 = vlaneseq
    %v878 = vshrl.u32 %v877, 7
    %880 = vset.pattern.permute.xlu0 %v878
    %881 = vperm.xlu0 %880, %v876
    %v882 = vpop.permute.xlu0 %881
    %v883 = vlaneseq
    %v884 = vshrl.u32 %v883, 7
    %v885 = vadd.s32 %v884, 8
    %886 = vset.pattern.permute.xlu0 %v885
    %887 = vperm.xlu0 %886, %v876
    %v888 = vpop.permute.xlu0 %887
    %v889 = vperm.slane %v17, 5
    %v890 = vlaneseq
    %v891 = vshrl.u32 %v890, 7
    %893 = vset.pattern.permute.xlu0 %v891
    %894 = vperm.xlu0 %893, %v889
    %v895 = vpop.permute.xlu0 %894
    %v896 = vlaneseq
    %v897 = vshrl.u32 %v896, 7
    %v898 = vadd.s32 %v897, 8
    %899 = vset.pattern.permute.xlu0 %v898
    %900 = vperm.xlu0 %899, %v889
    %v901 = vpop.permute.xlu0 %900
    %v902 = vperm.slane %v17, 6
    %v903 = vlaneseq
    %v904 = vshrl.u32 %v903, 7
    %906 = vset.pattern.permute.xlu0 %v904
    %907 = vperm.xlu0 %906, %v902
    %v908 = vpop.permute.xlu0 %907
    %v909 = vlaneseq
    %v910 = vshrl.u32 %v909, 7
    %v911 = vadd.s32 %v910, 8
    %912 = vset.pattern.permute.xlu0 %v911
    %913 = vperm.xlu0 %912, %v902
    %v914 = vpop.permute.xlu0 %913
    %v915 = vperm.slane %v17, 7
    %v916 = vlaneseq
    %v917 = vshrl.u32 %v916, 7
    %919 = vset.pattern.permute.xlu0 %v917
    %920 = vperm.xlu0 %919, %v915
    %v921 = vpop.permute.xlu0 %920
    %v922 = vlaneseq
    %v923 = vshrl.u32 %v922, 7
    %v924 = vadd.s32 %v923, 8
    %925 = vset.pattern.permute.xlu0 %v924
    %926 = vperm.xlu0 %925, %v915
    %v927 = vpop.permute.xlu0 %926
    %v928 = vperm.slane %v18, 0
    %v929 = vlaneseq
    %v930 = vshrl.u32 %v929, 7
    %932 = vset.pattern.permute.xlu0 %v930
    %933 = vperm.xlu0 %932, %v928
    %v934 = vpop.permute.xlu0 %933
    %v935 = vlaneseq
    %v936 = vshrl.u32 %v935, 7
    %v937 = vadd.s32 %v936, 8
    %938 = vset.pattern.permute.xlu0 %v937
    %939 = vperm.xlu0 %938, %v928
    %v940 = vpop.permute.xlu0 %939
    %v941 = vperm.slane %v18, 1
    %v942 = vlaneseq
    %v943 = vshrl.u32 %v942, 7
    %945 = vset.pattern.permute.xlu0 %v943
    %946 = vperm.xlu0 %945, %v941
    %v947 = vpop.permute.xlu0 %946
    %v948 = vlaneseq
    %v949 = vshrl.u32 %v948, 7
    %v950 = vadd.s32 %v949, 8
    %951 = vset.pattern.permute.xlu0 %v950
    %952 = vperm.xlu0 %951, %v941
    %v953 = vpop.permute.xlu0 %952
    %v954 = vperm.slane %v18, 2
    %v955 = vlaneseq
    %v956 = vshrl.u32 %v955, 7
    %958 = vset.pattern.permute.xlu0 %v956
    %959 = vperm.xlu0 %958, %v954
    %v960 = vpop.permute.xlu0 %959
    %v961 = vlaneseq
    %v962 = vshrl.u32 %v961, 7
    %v963 = vadd.s32 %v962, 8
    %964 = vset.pattern.permute.xlu0 %v963
    %965 = vperm.xlu0 %964, %v954
    %v966 = vpop.permute.xlu0 %965
    %v967 = vperm.slane %v18, 3
    %v968 = vlaneseq
    %v969 = vshrl.u32 %v968, 7
    %971 = vset.pattern.permute.xlu0 %v969
    %972 = vperm.xlu0 %971, %v967
    %v973 = vpop.permute.xlu0 %972
    %v974 = vlaneseq
    %v975 = vshrl.u32 %v974, 7
    %v976 = vadd.s32 %v975, 8
    %977 = vset.pattern.permute.xlu0 %v976
    %978 = vperm.xlu0 %977, %v967
    %v979 = vpop.permute.xlu0 %978
    %v980 = vperm.slane %v18, 4
    %v981 = vlaneseq
    %v982 = vshrl.u32 %v981, 7
    %984 = vset.pattern.permute.xlu0 %v982
    %985 = vperm.xlu0 %984, %v980
    %v986 = vpop.permute.xlu0 %985
    %v987 = vlaneseq
    %v988 = vshrl.u32 %v987, 7
    %v989 = vadd.s32 %v988, 8
    %990 = vset.pattern.permute.xlu0 %v989
    %991 = vperm.xlu0 %990, %v980
    %v992 = vpop.permute.xlu0 %991
    %v993 = vperm.slane %v18, 5
    %v994 = vlaneseq
    %v995 = vshrl.u32 %v994, 7
    %997 = vset.pattern.permute.xlu0 %v995
    %998 = vperm.xlu0 %997, %v993
    %v999 = vpop.permute.xlu0 %998
    %v1000 = vlaneseq
    %v1001 = vshrl.u32 %v1000, 7
    %v1002 = vadd.s32 %v1001, 8
    %1003 = vset.pattern.permute.xlu0 %v1002
    %1004 = vperm.xlu0 %1003, %v993
    %v1005 = vpop.permute.xlu0 %1004
    %v1006 = vperm.slane %v18, 6
    %v1007 = vlaneseq
    %v1008 = vshrl.u32 %v1007, 7
    %1010 = vset.pattern.permute.xlu0 %v1008
    %1011 = vperm.xlu0 %1010, %v1006
    %v1012 = vpop.permute.xlu0 %1011
    %v1013 = vlaneseq
    %v1014 = vshrl.u32 %v1013, 7
    %v1015 = vadd.s32 %v1014, 8
    %1016 = vset.pattern.permute.xlu0 %v1015
    %1017 = vperm.xlu0 %1016, %v1006
    %v1018 = vpop.permute.xlu0 %1017
    %v1019 = vperm.slane %v18, 7
    %v1020 = vlaneseq
    %v1021 = vshrl.u32 %v1020, 7
    %1023 = vset.pattern.permute.xlu0 %v1021
    %1024 = vperm.xlu0 %1023, %v1019
    %v1025 = vpop.permute.xlu0 %1024
    %v1026 = vlaneseq
    %v1027 = vshrl.u32 %v1026, 7
    %v1028 = vadd.s32 %v1027, 8
    %1029 = vset.pattern.permute.xlu0 %v1028
    %1030 = vperm.xlu0 %1029, %v1019
    %v1031 = vpop.permute.xlu0 %1030
    %v1032 = vperm.slane %v19, 0
    %v1033 = vlaneseq
    %v1034 = vshrl.u32 %v1033, 7
    %1036 = vset.pattern.permute.xlu0 %v1034
    %1037 = vperm.xlu0 %1036, %v1032
    %v1038 = vpop.permute.xlu0 %1037
    %v1039 = vlaneseq
    %v1040 = vshrl.u32 %v1039, 7
    %v1041 = vadd.s32 %v1040, 8
    %1042 = vset.pattern.permute.xlu0 %v1041
    %1043 = vperm.xlu0 %1042, %v1032
    %v1044 = vpop.permute.xlu0 %1043
    %v1045 = vperm.slane %v19, 1
    %v1046 = vlaneseq
    %v1047 = vshrl.u32 %v1046, 7
    %1049 = vset.pattern.permute.xlu0 %v1047
    %1050 = vperm.xlu0 %1049, %v1045
    %v1051 = vpop.permute.xlu0 %1050
    %v1052 = vlaneseq
    %v1053 = vshrl.u32 %v1052, 7
    %v1054 = vadd.s32 %v1053, 8
    %1055 = vset.pattern.permute.xlu0 %v1054
    %1056 = vperm.xlu0 %1055, %v1045
    %v1057 = vpop.permute.xlu0 %1056
    %v1058 = vperm.slane %v19, 2
    %v1059 = vlaneseq
    %v1060 = vshrl.u32 %v1059, 7
    %1062 = vset.pattern.permute.xlu0 %v1060
    %1063 = vperm.xlu0 %1062, %v1058
    %v1064 = vpop.permute.xlu0 %1063
    %v1065 = vlaneseq
    %v1066 = vshrl.u32 %v1065, 7
    %v1067 = vadd.s32 %v1066, 8
    %1068 = vset.pattern.permute.xlu0 %v1067
    %1069 = vperm.xlu0 %1068, %v1058
    %v1070 = vpop.permute.xlu0 %1069
    %v1071 = vperm.slane %v19, 3
    %v1072 = vlaneseq
    %v1073 = vshrl.u32 %v1072, 7
    %1075 = vset.pattern.permute.xlu0 %v1073
    %1076 = vperm.xlu0 %1075, %v1071
    %v1077 = vpop.permute.xlu0 %1076
    %v1078 = vlaneseq
    %v1079 = vshrl.u32 %v1078, 7
    %v1080 = vadd.s32 %v1079, 8
    %1081 = vset.pattern.permute.xlu0 %v1080
    %1082 = vperm.xlu0 %1081, %v1071
    %v1083 = vpop.permute.xlu0 %1082
    %v1084 = vperm.slane %v19, 4
    %v1085 = vlaneseq
    %v1086 = vshrl.u32 %v1085, 7
    %1088 = vset.pattern.permute.xlu0 %v1086
    %1089 = vperm.xlu0 %1088, %v1084
    %v1090 = vpop.permute.xlu0 %1089
    %v1091 = vlaneseq
    %v1092 = vshrl.u32 %v1091, 7
    %v1093 = vadd.s32 %v1092, 8
    %1094 = vset.pattern.permute.xlu0 %v1093
    %1095 = vperm.xlu0 %1094, %v1084
    %v1096 = vpop.permute.xlu0 %1095
    %v1097 = vperm.slane %v19, 5
    %v1098 = vlaneseq
    %v1099 = vshrl.u32 %v1098, 7
    %1101 = vset.pattern.permute.xlu0 %v1099
    %1102 = vperm.xlu0 %1101, %v1097
    %v1103 = vpop.permute.xlu0 %1102
    %v1104 = vlaneseq
    %v1105 = vshrl.u32 %v1104, 7
    %v1106 = vadd.s32 %v1105, 8
    %1107 = vset.pattern.permute.xlu0 %v1106
    %1108 = vperm.xlu0 %1107, %v1097
    %v1109 = vpop.permute.xlu0 %1108
    %v1110 = vperm.slane %v19, 6
    %v1111 = vlaneseq
    %v1112 = vshrl.u32 %v1111, 7
    %1114 = vset.pattern.permute.xlu0 %v1112
    %1115 = vperm.xlu0 %1114, %v1110
    %v1116 = vpop.permute.xlu0 %1115
    %v1117 = vlaneseq
    %v1118 = vshrl.u32 %v1117, 7
    %v1119 = vadd.s32 %v1118, 8
    %1120 = vset.pattern.permute.xlu0 %v1119
    %1121 = vperm.xlu0 %1120, %v1110
    %v1122 = vpop.permute.xlu0 %1121
    %v1123 = vperm.slane %v19, 7
    %v1124 = vlaneseq
    %v1125 = vshrl.u32 %v1124, 7
    %1127 = vset.pattern.permute.xlu0 %v1125
    %1128 = vperm.xlu0 %1127, %v1123
    %v1129 = vpop.permute.xlu0 %1128
    %v1130 = vlaneseq
    %v1131 = vshrl.u32 %v1130, 7
    %v1132 = vadd.s32 %v1131, 8
    %1133 = vset.pattern.permute.xlu0 %v1132
    %1134 = vperm.xlu0 %1133, %v1123
    %v1135 = vpop.permute.xlu0 %1134
    %v1136 = vrot.slane %v752, 4
    %v1137 = vsel %vm117, %v1136, %v726
    %v1138 = vrot.slane %v726, 4
    %v1139 = vsel %vm117, %v752, %v1138
    %v1141 = vunpack.c.l.s4 1983009808
    %v1142 = vunpack.c.0.s8 %v1141
    %v1143 = vperm.slane %v1137, %v1142
    %v1145 = vunpack.c.l.s4 1983009808
    %v1146 = vunpack.c.0.s8 %v1145
    %v1147 = vperm.slane %v1139, %v1146
    %v1148 = vrot.slane %v765, 4
    %v1149 = vsel %vm117, %v1148, %v739
    %v1150 = vrot.slane %v739, 4
    %v1151 = vsel %vm117, %v765, %v1150
    %v1153 = vunpack.c.l.s4 1983009808
    %v1154 = vunpack.c.0.s8 %v1153
    %v1155 = vperm.slane %v1149, %v1154
    %v1157 = vunpack.c.l.s4 1983009808
    %v1158 = vunpack.c.0.s8 %v1157
    %v1159 = vperm.slane %v1151, %v1158
    %v1160 = vrot.slane %v804, 4
    %v1161 = vsel %vm117, %v1160, %v778
    %v1162 = vrot.slane %v778, 4
    %v1163 = vsel %vm117, %v804, %v1162
    %v1165 = vunpack.c.l.s4 1983009808
    %v1166 = vunpack.c.0.s8 %v1165
    %v1167 = vperm.slane %v1161, %v1166
    %v1169 = vunpack.c.l.s4 1983009808
    %v1170 = vunpack.c.0.s8 %v1169
    %v1171 = vperm.slane %v1163, %v1170
    %v1172 = vrot.slane %v817, 4
    %v1173 = vsel %vm117, %v1172, %v791
    %v1174 = vrot.slane %v791, 4
    %v1175 = vsel %vm117, %v817, %v1174
    %v1177 = vunpack.c.l.s4 1983009808
    %v1178 = vunpack.c.0.s8 %v1177
    %v1179 = vperm.slane %v1173, %v1178
    %v1181 = vunpack.c.l.s4 1983009808
    %v1182 = vunpack.c.0.s8 %v1181
    %v1183 = vperm.slane %v1175, %v1182
    %v1184 = vrot.slane %v1155, 4
    %v1185 = vsel %vm117, %v1184, %v1143
    %v1186 = vrot.slane %v1143, 4
    %v1187 = vsel %vm117, %v1155, %v1186
    %v1189 = vunpack.c.l.s4 1934713408
    %v1190 = vunpack.c.0.s8 %v1189
    %v1191 = vperm.slane %v1185, %v1190
    %v1193 = vunpack.c.l.s4 1934713408
    %v1194 = vunpack.c.0.s8 %v1193
    %v1195 = vperm.slane %v1187, %v1194
    %v1196 = vrot.slane %v1159, 4
    %v1197 = vsel %vm117, %v1196, %v1147
    %v1198 = vrot.slane %v1147, 4
    %v1199 = vsel %vm117, %v1159, %v1198
    %v1201 = vunpack.c.l.s4 1934713408
    %v1202 = vunpack.c.0.s8 %v1201
    %v1203 = vperm.slane %v1197, %v1202
    %v1205 = vunpack.c.l.s4 1934713408
    %v1206 = vunpack.c.0.s8 %v1205
    %v1207 = vperm.slane %v1199, %v1206
    %v1208 = vrot.slane %v1179, 4
    %v1209 = vsel %vm117, %v1208, %v1167
    %v1210 = vrot.slane %v1167, 4
    %v1211 = vsel %vm117, %v1179, %v1210
    %v1213 = vunpack.c.l.s4 1934713408
    %v1214 = vunpack.c.0.s8 %v1213
    %v1215 = vperm.slane %v1209, %v1214
    %v1217 = vunpack.c.l.s4 1934713408
    %v1218 = vunpack.c.0.s8 %v1217
    %v1219 = vperm.slane %v1211, %v1218
    %v1220 = vrot.slane %v1183, 4
    %v1221 = vsel %vm117, %v1220, %v1171
    %v1222 = vrot.slane %v1171, 4
    %v1223 = vsel %vm117, %v1183, %v1222
    %v1225 = vunpack.c.l.s4 1934713408
    %v1226 = vunpack.c.0.s8 %v1225
    %v1227 = vperm.slane %v1221, %v1226
    %v1229 = vunpack.c.l.s4 1934713408
    %v1230 = vunpack.c.0.s8 %v1229
    %v1231 = vperm.slane %v1223, %v1230
    %v1232 = vrot.slane %v1215, 4
    %v1233 = vsel %vm117, %v1232, %v1191
    %v1234 = vrot.slane %v1191, 4
    %v1235 = vsel %vm117, %v1215, %v1234
    %v1236 = vrot.slane %v1219, 4
    %v1237 = vsel %vm117, %v1236, %v1195
    %v1238 = vrot.slane %v1195, 4
    %v1239 = vsel %vm117, %v1219, %v1238
    %v1240 = vrot.slane %v1227, 4
    %v1241 = vsel %vm117, %v1240, %v1203
    %v1242 = vrot.slane %v1203, 4
    %v1243 = vsel %vm117, %v1227, %v1242
    %v1244 = vrot.slane %v1231, 4
    %v1245 = vsel %vm117, %v1244, %v1207
    %v1246 = vrot.slane %v1207, 4
    %v1247 = vsel %vm117, %v1231, %v1246
    %v1248 = vrot.slane %v856, 4
    %v1249 = vsel %vm117, %v1248, %v830
    %v1250 = vrot.slane %v830, 4
    %v1251 = vsel %vm117, %v856, %v1250
    %v1253 = vunpack.c.l.s4 1983009808
    %v1254 = vunpack.c.0.s8 %v1253
    %v1255 = vperm.slane %v1249, %v1254
    %v1257 = vunpack.c.l.s4 1983009808
    %v1258 = vunpack.c.0.s8 %v1257
    %v1259 = vperm.slane %v1251, %v1258
    %v1260 = vrot.slane %v869, 4
    %v1261 = vsel %vm117, %v1260, %v843
    %v1262 = vrot.slane %v843, 4
    %v1263 = vsel %vm117, %v869, %v1262
    %v1265 = vunpack.c.l.s4 1983009808
    %v1266 = vunpack.c.0.s8 %v1265
    %v1267 = vperm.slane %v1261, %v1266
    %v1269 = vunpack.c.l.s4 1983009808
    %v1270 = vunpack.c.0.s8 %v1269
    %v1271 = vperm.slane %v1263, %v1270
    %v1272 = vrot.slane %v908, 4
    %v1273 = vsel %vm117, %v1272, %v882
    %v1274 = vrot.slane %v882, 4
    %v1275 = vsel %vm117, %v908, %v1274
    %v1277 = vunpack.c.l.s4 1983009808
    %v1278 = vunpack.c.0.s8 %v1277
    %v1279 = vperm.slane %v1273, %v1278
    %v1281 = vunpack.c.l.s4 1983009808
    %v1282 = vunpack.c.0.s8 %v1281
    %v1283 = vperm.slane %v1275, %v1282
    %v1284 = vrot.slane %v921, 4
    %v1285 = vsel %vm117, %v1284, %v895
    %v1286 = vrot.slane %v895, 4
    %v1287 = vsel %vm117, %v921, %v1286
    %v1289 = vunpack.c.l.s4 1983009808
    %v1290 = vunpack.c.0.s8 %v1289
    %v1291 = vperm.slane %v1285, %v1290
    %v1293 = vunpack.c.l.s4 1983009808
    %v1294 = vunpack.c.0.s8 %v1293
    %v1295 = vperm.slane %v1287, %v1294
    %v1296 = vrot.slane %v1267, 4
    %v1297 = vsel %vm117, %v1296, %v1255
    %v1298 = vrot.slane %v1255, 4
    %v1299 = vsel %vm117, %v1267, %v1298
    %v1301 = vunpack.c.l.s4 1934713408
    %v1302 = vunpack.c.0.s8 %v1301
    %v1303 = vperm.slane %v1297, %v1302
    %v1305 = vunpack.c.l.s4 1934713408
    %v1306 = vunpack.c.0.s8 %v1305
    %v1307 = vperm.slane %v1299, %v1306
    %v1308 = vrot.slane %v1271, 4
    %v1309 = vsel %vm117, %v1308, %v1259
    %v1310 = vrot.slane %v1259, 4
    %v1311 = vsel %vm117, %v1271, %v1310
    %v1313 = vunpack.c.l.s4 1934713408
    %v1314 = vunpack.c.0.s8 %v1313
    %v1315 = vperm.slane %v1309, %v1314
    %v1317 = vunpack.c.l.s4 1934713408
    %v1318 = vunpack.c.0.s8 %v1317
    %v1319 = vperm.slane %v1311, %v1318
    %v1320 = vrot.slane %v1291, 4
    %v1321 = vsel %vm117, %v1320, %v1279
    %v1322 = vrot.slane %v1279, 4
    %v1323 = vsel %vm117, %v1291, %v1322
    %v1325 = vunpack.c.l.s4 1934713408
    %v1326 = vunpack.c.0.s8 %v1325
    %v1327 = vperm.slane %v1321, %v1326
    %v1329 = vunpack.c.l.s4 1934713408
    %v1330 = vunpack.c.0.s8 %v1329
    %v1331 = vperm.slane %v1323, %v1330
    %v1332 = vrot.slane %v1295, 4
    %v1333 = vsel %vm117, %v1332, %v1283
    %v1334 = vrot.slane %v1283, 4
    %v1335 = vsel %vm117, %v1295, %v1334
    %v1337 = vunpack.c.l.s4 1934713408
    %v1338 = vunpack.c.0.s8 %v1337
    %v1339 = vperm.slane %v1333, %v1338
    %v1341 = vunpack.c.l.s4 1934713408
    %v1342 = vunpack.c.0.s8 %v1341
    %v1343 = vperm.slane %v1335, %v1342
    %v1344 = vrot.slane %v1327, 4
    %v1345 = vsel %vm117, %v1344, %v1303
    %v1346 = vrot.slane %v1303, 4
    %v1347 = vsel %vm117, %v1327, %v1346
    %v1348 = vrot.slane %v1331, 4
    %v1349 = vsel %vm117, %v1348, %v1307
    %v1350 = vrot.slane %v1307, 4
    %v1351 = vsel %vm117, %v1331, %v1350
    %v1352 = vrot.slane %v1339, 4
    %v1353 = vsel %vm117, %v1352, %v1315
    %v1354 = vrot.slane %v1315, 4
    %v1355 = vsel %vm117, %v1339, %v1354
    %v1356 = vrot.slane %v1343, 4
    %v1357 = vsel %vm117, %v1356, %v1319
    %v1358 = vrot.slane %v1319, 4
    %v1359 = vsel %vm117, %v1343, %v1358
    %v1360 = vrot.slane %v960, 4
    %v1361 = vsel %vm117, %v1360, %v934
    %v1362 = vrot.slane %v934, 4
    %v1363 = vsel %vm117, %v960, %v1362
    %v1365 = vunpack.c.l.s4 1983009808
    %v1366 = vunpack.c.0.s8 %v1365
    %v1367 = vperm.slane %v1361, %v1366
    %v1369 = vunpack.c.l.s4 1983009808
    %v1370 = vunpack.c.0.s8 %v1369
    %v1371 = vperm.slane %v1363, %v1370
    %v1372 = vrot.slane %v973, 4
    %v1373 = vsel %vm117, %v1372, %v947
    %v1374 = vrot.slane %v947, 4
    %v1375 = vsel %vm117, %v973, %v1374
    %v1377 = vunpack.c.l.s4 1983009808
    %v1378 = vunpack.c.0.s8 %v1377
    %v1379 = vperm.slane %v1373, %v1378
    %v1381 = vunpack.c.l.s4 1983009808
    %v1382 = vunpack.c.0.s8 %v1381
    %v1383 = vperm.slane %v1375, %v1382
    %v1384 = vrot.slane %v1012, 4
    %v1385 = vsel %vm117, %v1384, %v986
    %v1386 = vrot.slane %v986, 4
    %v1387 = vsel %vm117, %v1012, %v1386
    %v1389 = vunpack.c.l.s4 1983009808
    %v1390 = vunpack.c.0.s8 %v1389
    %v1391 = vperm.slane %v1385, %v1390
    %v1393 = vunpack.c.l.s4 1983009808
    %v1394 = vunpack.c.0.s8 %v1393
    %v1395 = vperm.slane %v1387, %v1394
    %v1396 = vrot.slane %v1025, 4
    %v1397 = vsel %vm117, %v1396, %v999
    %v1398 = vrot.slane %v999, 4
    %v1399 = vsel %vm117, %v1025, %v1398
    %v1401 = vunpack.c.l.s4 1983009808
    %v1402 = vunpack.c.0.s8 %v1401
    %v1403 = vperm.slane %v1397, %v1402
    %v1405 = vunpack.c.l.s4 1983009808
    %v1406 = vunpack.c.0.s8 %v1405
    %v1407 = vperm.slane %v1399, %v1406
    %v1408 = vrot.slane %v1379, 4
    %v1409 = vsel %vm117, %v1408, %v1367
    %v1410 = vrot.slane %v1367, 4
    %v1411 = vsel %vm117, %v1379, %v1410
    %v1413 = vunpack.c.l.s4 1934713408
    %v1414 = vunpack.c.0.s8 %v1413
    %v1415 = vperm.slane %v1409, %v1414
    %v1417 = vunpack.c.l.s4 1934713408
    %v1418 = vunpack.c.0.s8 %v1417
    %v1419 = vperm.slane %v1411, %v1418
    %v1420 = vrot.slane %v1383, 4
    %v1421 = vsel %vm117, %v1420, %v1371
    %v1422 = vrot.slane %v1371, 4
    %v1423 = vsel %vm117, %v1383, %v1422
    %v1425 = vunpack.c.l.s4 1934713408
    %v1426 = vunpack.c.0.s8 %v1425
    %v1427 = vperm.slane %v1421, %v1426
    %v1429 = vunpack.c.l.s4 1934713408
    %v1430 = vunpack.c.0.s8 %v1429
    %v1431 = vperm.slane %v1423, %v1430
    %v1432 = vrot.slane %v1403, 4
    %v1433 = vsel %vm117, %v1432, %v1391
    %v1434 = vrot.slane %v1391, 4
    %v1435 = vsel %vm117, %v1403, %v1434
    %v1437 = vunpack.c.l.s4 1934713408
    %v1438 = vunpack.c.0.s8 %v1437
    %v1439 = vperm.slane %v1433, %v1438
    %v1441 = vunpack.c.l.s4 1934713408
    %v1442 = vunpack.c.0.s8 %v1441
    %v1443 = vperm.slane %v1435, %v1442
    %v1444 = vrot.slane %v1407, 4
    %v1445 = vsel %vm117, %v1444, %v1395
    %v1446 = vrot.slane %v1395, 4
    %v1447 = vsel %vm117, %v1407, %v1446
    %v1449 = vunpack.c.l.s4 1934713408
    %v1450 = vunpack.c.0.s8 %v1449
    %v1451 = vperm.slane %v1445, %v1450
    %v1453 = vunpack.c.l.s4 1934713408
    %v1454 = vunpack.c.0.s8 %v1453
    %v1455 = vperm.slane %v1447, %v1454
    %v1456 = vrot.slane %v1439, 4
    %v1457 = vsel %vm117, %v1456, %v1415
    %v1458 = vrot.slane %v1415, 4
    %v1459 = vsel %vm117, %v1439, %v1458
    %v1460 = vrot.slane %v1443, 4
    %v1461 = vsel %vm117, %v1460, %v1419
    %v1462 = vrot.slane %v1419, 4
    %v1463 = vsel %vm117, %v1443, %v1462
    %v1464 = vrot.slane %v1451, 4
    %v1465 = vsel %vm117, %v1464, %v1427
    %v1466 = vrot.slane %v1427, 4
    %v1467 = vsel %vm117, %v1451, %v1466
    %v1468 = vrot.slane %v1455, 4
    %v1469 = vsel %vm117, %v1468, %v1431
    %v1470 = vrot.slane %v1431, 4
    %v1471 = vsel %vm117, %v1455, %v1470
    %v1472 = vrot.slane %v1064, 4
    %v1473 = vsel %vm117, %v1472, %v1038
    %v1474 = vrot.slane %v1038, 4
    %v1475 = vsel %vm117, %v1064, %v1474
    %v1477 = vunpack.c.l.s4 1983009808
    %v1478 = vunpack.c.0.s8 %v1477
    %v1479 = vperm.slane %v1473, %v1478
    %v1481 = vunpack.c.l.s4 1983009808
    %v1482 = vunpack.c.0.s8 %v1481
    %v1483 = vperm.slane %v1475, %v1482
    %v1484 = vrot.slane %v1077, 4
    %v1485 = vsel %vm117, %v1484, %v1051
    %v1486 = vrot.slane %v1051, 4
    %v1487 = vsel %vm117, %v1077, %v1486
    %v1489 = vunpack.c.l.s4 1983009808
    %v1490 = vunpack.c.0.s8 %v1489
    %v1491 = vperm.slane %v1485, %v1490
    %v1493 = vunpack.c.l.s4 1983009808
    %v1494 = vunpack.c.0.s8 %v1493
    %v1495 = vperm.slane %v1487, %v1494
    %v1496 = vrot.slane %v1116, 4
    %v1497 = vsel %vm117, %v1496, %v1090
    %v1498 = vrot.slane %v1090, 4
    %v1499 = vsel %vm117, %v1116, %v1498
    %v1501 = vunpack.c.l.s4 1983009808
    %v1502 = vunpack.c.0.s8 %v1501
    %v1503 = vperm.slane %v1497, %v1502
    %v1505 = vunpack.c.l.s4 1983009808
    %v1506 = vunpack.c.0.s8 %v1505
    %v1507 = vperm.slane %v1499, %v1506
    %v1508 = vrot.slane %v1129, 4
    %v1509 = vsel %vm117, %v1508, %v1103
    %v1510 = vrot.slane %v1103, 4
    %v1511 = vsel %vm117, %v1129, %v1510
    %v1513 = vunpack.c.l.s4 1983009808
    %v1514 = vunpack.c.0.s8 %v1513
    %v1515 = vperm.slane %v1509, %v1514
    %v1517 = vunpack.c.l.s4 1983009808
    %v1518 = vunpack.c.0.s8 %v1517
    %v1519 = vperm.slane %v1511, %v1518
    %v1520 = vrot.slane %v1491, 4
    %v1521 = vsel %vm117, %v1520, %v1479
    %v1522 = vrot.slane %v1479, 4
    %v1523 = vsel %vm117, %v1491, %v1522
    %v1525 = vunpack.c.l.s4 1934713408
    %v1526 = vunpack.c.0.s8 %v1525
    %v1527 = vperm.slane %v1521, %v1526
    %v1529 = vunpack.c.l.s4 1934713408
    %v1530 = vunpack.c.0.s8 %v1529
    %v1531 = vperm.slane %v1523, %v1530
    %v1532 = vrot.slane %v1495, 4
    %v1533 = vsel %vm117, %v1532, %v1483
    %v1534 = vrot.slane %v1483, 4
    %v1535 = vsel %vm117, %v1495, %v1534
    %v1537 = vunpack.c.l.s4 1934713408
    %v1538 = vunpack.c.0.s8 %v1537
    %v1539 = vperm.slane %v1533, %v1538
    %v1541 = vunpack.c.l.s4 1934713408
    %v1542 = vunpack.c.0.s8 %v1541
    %v1543 = vperm.slane %v1535, %v1542
    %v1544 = vrot.slane %v1515, 4
    %v1545 = vsel %vm117, %v1544, %v1503
    %v1546 = vrot.slane %v1503, 4
    %v1547 = vsel %vm117, %v1515, %v1546
    %v1549 = vunpack.c.l.s4 1934713408
    %v1550 = vunpack.c.0.s8 %v1549
    %v1551 = vperm.slane %v1545, %v1550
    %v1553 = vunpack.c.l.s4 1934713408
    %v1554 = vunpack.c.0.s8 %v1553
    %v1555 = vperm.slane %v1547, %v1554
    %v1556 = vrot.slane %v1519, 4
    %v1557 = vsel %vm117, %v1556, %v1507
    %v1558 = vrot.slane %v1507, 4
    %v1559 = vsel %vm117, %v1519, %v1558
    %v1561 = vunpack.c.l.s4 1934713408
    %v1562 = vunpack.c.0.s8 %v1561
    %v1563 = vperm.slane %v1557, %v1562
    %v1565 = vunpack.c.l.s4 1934713408
    %v1566 = vunpack.c.0.s8 %v1565
    %v1567 = vperm.slane %v1559, %v1566
    %v1568 = vrot.slane %v1551, 4
    %v1569 = vsel %vm117, %v1568, %v1527
    %v1570 = vrot.slane %v1527, 4
    %v1571 = vsel %vm117, %v1551, %v1570
    %v1572 = vrot.slane %v1555, 4
    %v1573 = vsel %vm117, %v1572, %v1531
    %v1574 = vrot.slane %v1531, 4
    %v1575 = vsel %vm117, %v1555, %v1574
    %v1576 = vrot.slane %v1563, 4
    %v1577 = vsel %vm117, %v1576, %v1539
    %v1578 = vrot.slane %v1539, 4
    %v1579 = vsel %vm117, %v1563, %v1578
    %v1580 = vrot.slane %v1567, 4
    %v1581 = vsel %vm117, %v1580, %v1543
    %v1582 = vrot.slane %v1543, 4
    %v1583 = vsel %vm117, %v1567, %v1582
    %v1584 = vrot.slane %v758, 4
    %v1585 = vsel %vm117, %v1584, %v732
    %v1586 = vrot.slane %v732, 4
    %v1587 = vsel %vm117, %v758, %v1586
    %v1589 = vunpack.c.l.s4 1983009808
    %v1590 = vunpack.c.0.s8 %v1589
    %v1591 = vperm.slane %v1585, %v1590
    %v1593 = vunpack.c.l.s4 1983009808
    %v1594 = vunpack.c.0.s8 %v1593
    %v1595 = vperm.slane %v1587, %v1594
    %v1596 = vrot.slane %v771, 4
    %v1597 = vsel %vm117, %v1596, %v745
    %v1598 = vrot.slane %v745, 4
    %v1599 = vsel %vm117, %v771, %v1598
    %v1601 = vunpack.c.l.s4 1983009808
    %v1602 = vunpack.c.0.s8 %v1601
    %v1603 = vperm.slane %v1597, %v1602
    %v1605 = vunpack.c.l.s4 1983009808
    %v1606 = vunpack.c.0.s8 %v1605
    %v1607 = vperm.slane %v1599, %v1606
    %v1608 = vrot.slane %v810, 4
    %v1609 = vsel %vm117, %v1608, %v784
    %v1610 = vrot.slane %v784, 4
    %v1611 = vsel %vm117, %v810, %v1610
    %v1613 = vunpack.c.l.s4 1983009808
    %v1614 = vunpack.c.0.s8 %v1613
    %v1615 = vperm.slane %v1609, %v1614
    %v1617 = vunpack.c.l.s4 1983009808
    %v1618 = vunpack.c.0.s8 %v1617
    %v1619 = vperm.slane %v1611, %v1618
    %v1620 = vrot.slane %v823, 4
    %v1621 = vsel %vm117, %v1620, %v797
    %v1622 = vrot.slane %v797, 4
    %v1623 = vsel %vm117, %v823, %v1622
    %v1625 = vunpack.c.l.s4 1983009808
    %v1626 = vunpack.c.0.s8 %v1625
    %v1627 = vperm.slane %v1621, %v1626
    %v1629 = vunpack.c.l.s4 1983009808
    %v1630 = vunpack.c.0.s8 %v1629
    %v1631 = vperm.slane %v1623, %v1630
    %v1632 = vrot.slane %v1603, 4
    %v1633 = vsel %vm117, %v1632, %v1591
    %v1634 = vrot.slane %v1591, 4
    %v1635 = vsel %vm117, %v1603, %v1634
    %v1637 = vunpack.c.l.s4 1934713408
    %v1638 = vunpack.c.0.s8 %v1637
    %v1639 = vperm.slane %v1633, %v1638
    %v1641 = vunpack.c.l.s4 1934713408
    %v1642 = vunpack.c.0.s8 %v1641
    %v1643 = vperm.slane %v1635, %v1642
    %v1644 = vrot.slane %v1607, 4
    %v1645 = vsel %vm117, %v1644, %v1595
    %v1646 = vrot.slane %v1595, 4
    %v1647 = vsel %vm117, %v1607, %v1646
    %v1649 = vunpack.c.l.s4 1934713408
    %v1650 = vunpack.c.0.s8 %v1649
    %v1651 = vperm.slane %v1645, %v1650
    %v1653 = vunpack.c.l.s4 1934713408
    %v1654 = vunpack.c.0.s8 %v1653
    %v1655 = vperm.slane %v1647, %v1654
    %v1656 = vrot.slane %v1627, 4
    %v1657 = vsel %vm117, %v1656, %v1615
    %v1658 = vrot.slane %v1615, 4
    %v1659 = vsel %vm117, %v1627, %v1658
    %v1661 = vunpack.c.l.s4 1934713408
    %v1662 = vunpack.c.0.s8 %v1661
    %v1663 = vperm.slane %v1657, %v1662
    %v1665 = vunpack.c.l.s4 1934713408
    %v1666 = vunpack.c.0.s8 %v1665
    %v1667 = vperm.slane %v1659, %v1666
    %v1668 = vrot.slane %v1631, 4
    %v1669 = vsel %vm117, %v1668, %v1619
    %v1670 = vrot.slane %v1619, 4
    %v1671 = vsel %vm117, %v1631, %v1670
    %v1673 = vunpack.c.l.s4 1934713408
    %v1674 = vunpack.c.0.s8 %v1673
    %v1675 = vperm.slane %v1669, %v1674
    %v1677 = vunpack.c.l.s4 1934713408
    %v1678 = vunpack.c.0.s8 %v1677
    %v1679 = vperm.slane %v1671, %v1678
    %v1680 = vrot.slane %v1663, 4
    %v1681 = vsel %vm117, %v1680, %v1639
    %v1682 = vrot.slane %v1639, 4
    %v1683 = vsel %vm117, %v1663, %v1682
    %v1684 = vrot.slane %v1667, 4
    %v1685 = vsel %vm117, %v1684, %v1643
    %v1686 = vrot.slane %v1643, 4
    %v1687 = vsel %vm117, %v1667, %v1686
    %v1688 = vrot.slane %v1675, 4
    %v1689 = vsel %vm117, %v1688, %v1651
    %v1690 = vrot.slane %v1651, 4
    %v1691 = vsel %vm117, %v1675, %v1690
    %v1692 = vrot.slane %v1679, 4
    %v1693 = vsel %vm117, %v1692, %v1655
    %v1694 = vrot.slane %v1655, 4
    %v1695 = vsel %vm117, %v1679, %v1694
    %v1696 = vrot.slane %v862, 4
    %v1697 = vsel %vm117, %v1696, %v836
    %v1698 = vrot.slane %v836, 4
    %v1699 = vsel %vm117, %v862, %v1698
    %v1701 = vunpack.c.l.s4 1983009808
    %v1702 = vunpack.c.0.s8 %v1701
    %v1703 = vperm.slane %v1697, %v1702
    %v1705 = vunpack.c.l.s4 1983009808
    %v1706 = vunpack.c.0.s8 %v1705
    %v1707 = vperm.slane %v1699, %v1706
    %v1708 = vrot.slane %v875, 4
    %v1709 = vsel %vm117, %v1708, %v849
    %v1710 = vrot.slane %v849, 4
    %v1711 = vsel %vm117, %v875, %v1710
    %v1713 = vunpack.c.l.s4 1983009808
    %v1714 = vunpack.c.0.s8 %v1713
    %v1715 = vperm.slane %v1709, %v1714
    %v1717 = vunpack.c.l.s4 1983009808
    %v1718 = vunpack.c.0.s8 %v1717
    %v1719 = vperm.slane %v1711, %v1718
    %v1720 = vrot.slane %v914, 4
    %v1721 = vsel %vm117, %v1720, %v888
    %v1722 = vrot.slane %v888, 4
    %v1723 = vsel %vm117, %v914, %v1722
    %v1725 = vunpack.c.l.s4 1983009808
    %v1726 = vunpack.c.0.s8 %v1725
    %v1727 = vperm.slane %v1721, %v1726
    %v1729 = vunpack.c.l.s4 1983009808
    %v1730 = vunpack.c.0.s8 %v1729
    %v1731 = vperm.slane %v1723, %v1730
    %v1732 = vrot.slane %v927, 4
    %v1733 = vsel %vm117, %v1732, %v901
    %v1734 = vrot.slane %v901, 4
    %v1735 = vsel %vm117, %v927, %v1734
    %v1737 = vunpack.c.l.s4 1983009808
    %v1738 = vunpack.c.0.s8 %v1737
    %v1739 = vperm.slane %v1733, %v1738
    %v1741 = vunpack.c.l.s4 1983009808
    %v1742 = vunpack.c.0.s8 %v1741
    %v1743 = vperm.slane %v1735, %v1742
    %v1744 = vrot.slane %v1715, 4
    %v1745 = vsel %vm117, %v1744, %v1703
    %v1746 = vrot.slane %v1703, 4
    %v1747 = vsel %vm117, %v1715, %v1746
    %v1749 = vunpack.c.l.s4 1934713408
    %v1750 = vunpack.c.0.s8 %v1749
    %v1751 = vperm.slane %v1745, %v1750
    %v1753 = vunpack.c.l.s4 1934713408
    %v1754 = vunpack.c.0.s8 %v1753
    %v1755 = vperm.slane %v1747, %v1754
    %v1756 = vrot.slane %v1719, 4
    %v1757 = vsel %vm117, %v1756, %v1707
    %v1758 = vrot.slane %v1707, 4
    %v1759 = vsel %vm117, %v1719, %v1758
    %v1761 = vunpack.c.l.s4 1934713408
    %v1762 = vunpack.c.0.s8 %v1761
    %v1763 = vperm.slane %v1757, %v1762
    %v1765 = vunpack.c.l.s4 1934713408
    %v1766 = vunpack.c.0.s8 %v1765
    %v1767 = vperm.slane %v1759, %v1766
    %v1768 = vrot.slane %v1739, 4
    %v1769 = vsel %vm117, %v1768, %v1727
    %v1770 = vrot.slane %v1727, 4
    %v1771 = vsel %vm117, %v1739, %v1770
    %v1773 = vunpack.c.l.s4 1934713408
    %v1774 = vunpack.c.0.s8 %v1773
    %v1775 = vperm.slane %v1769, %v1774
    %v1777 = vunpack.c.l.s4 1934713408
    %v1778 = vunpack.c.0.s8 %v1777
    %v1779 = vperm.slane %v1771, %v1778
    %v1780 = vrot.slane %v1743, 4
    %v1781 = vsel %vm117, %v1780, %v1731
    %v1782 = vrot.slane %v1731, 4
    %v1783 = vsel %vm117, %v1743, %v1782
    %v1785 = vunpack.c.l.s4 1934713408
    %v1786 = vunpack.c.0.s8 %v1785
    %v1787 = vperm.slane %v1781, %v1786
    %v1789 = vunpack.c.l.s4 1934713408
    %v1790 = vunpack.c.0.s8 %v1789
    %v1791 = vperm.slane %v1783, %v1790
    %v1792 = vrot.slane %v1775, 4
    %v1793 = vsel %vm117, %v1792, %v1751
    %v1794 = vrot.slane %v1751, 4
    %v1795 = vsel %vm117, %v1775, %v1794
    %v1796 = vrot.slane %v1779, 4
    %v1797 = vsel %vm117, %v1796, %v1755
    %v1798 = vrot.slane %v1755, 4
    %v1799 = vsel %vm117, %v1779, %v1798
    %v1800 = vrot.slane %v1787, 4
    %v1801 = vsel %vm117, %v1800, %v1763
    %v1802 = vrot.slane %v1763, 4
    %v1803 = vsel %vm117, %v1787, %v1802
    %v1804 = vrot.slane %v1791, 4
    %v1805 = vsel %vm117, %v1804, %v1767
    %v1806 = vrot.slane %v1767, 4
    %v1807 = vsel %vm117, %v1791, %v1806
    %v1808 = vrot.slane %v966, 4
    %v1809 = vsel %vm117, %v1808, %v940
    %v1810 = vrot.slane %v940, 4
    %v1811 = vsel %vm117, %v966, %v1810
    %v1813 = vunpack.c.l.s4 1983009808
    %v1814 = vunpack.c.0.s8 %v1813
    %v1815 = vperm.slane %v1809, %v1814
    %v1817 = vunpack.c.l.s4 1983009808
    %v1818 = vunpack.c.0.s8 %v1817
    %v1819 = vperm.slane %v1811, %v1818
    %v1820 = vrot.slane %v979, 4
    %v1821 = vsel %vm117, %v1820, %v953
    %v1822 = vrot.slane %v953, 4
    %v1823 = vsel %vm117, %v979, %v1822
    %v1825 = vunpack.c.l.s4 1983009808
    %v1826 = vunpack.c.0.s8 %v1825
    %v1827 = vperm.slane %v1821, %v1826
    %v1829 = vunpack.c.l.s4 1983009808
    %v1830 = vunpack.c.0.s8 %v1829
    %v1831 = vperm.slane %v1823, %v1830
    %v1832 = vrot.slane %v1018, 4
    %v1833 = vsel %vm117, %v1832, %v992
    %v1834 = vrot.slane %v992, 4
    %v1835 = vsel %vm117, %v1018, %v1834
    %v1837 = vunpack.c.l.s4 1983009808
    %v1838 = vunpack.c.0.s8 %v1837
    %v1839 = vperm.slane %v1833, %v1838
    %v1841 = vunpack.c.l.s4 1983009808
    %v1842 = vunpack.c.0.s8 %v1841
    %v1843 = vperm.slane %v1835, %v1842
    %v1844 = vrot.slane %v1031, 4
    %v1845 = vsel %vm117, %v1844, %v1005
    %v1846 = vrot.slane %v1005, 4
    %v1847 = vsel %vm117, %v1031, %v1846
    %v1849 = vunpack.c.l.s4 1983009808
    %v1850 = vunpack.c.0.s8 %v1849
    %v1851 = vperm.slane %v1845, %v1850
    %v1853 = vunpack.c.l.s4 1983009808
    %v1854 = vunpack.c.0.s8 %v1853
    %v1855 = vperm.slane %v1847, %v1854
    %v1856 = vrot.slane %v1827, 4
    %v1857 = vsel %vm117, %v1856, %v1815
    %v1858 = vrot.slane %v1815, 4
    %v1859 = vsel %vm117, %v1827, %v1858
    %v1861 = vunpack.c.l.s4 1934713408
    %v1862 = vunpack.c.0.s8 %v1861
    %v1863 = vperm.slane %v1857, %v1862
    %v1865 = vunpack.c.l.s4 1934713408
    %v1866 = vunpack.c.0.s8 %v1865
    %v1867 = vperm.slane %v1859, %v1866
    %v1868 = vrot.slane %v1831, 4
    %v1869 = vsel %vm117, %v1868, %v1819
    %v1870 = vrot.slane %v1819, 4
    %v1871 = vsel %vm117, %v1831, %v1870
    %v1873 = vunpack.c.l.s4 1934713408
    %v1874 = vunpack.c.0.s8 %v1873
    %v1875 = vperm.slane %v1869, %v1874
    %v1877 = vunpack.c.l.s4 1934713408
    %v1878 = vunpack.c.0.s8 %v1877
    %v1879 = vperm.slane %v1871, %v1878
    %v1880 = vrot.slane %v1851, 4
    %v1881 = vsel %vm117, %v1880, %v1839
    %v1882 = vrot.slane %v1839, 4
    %v1883 = vsel %vm117, %v1851, %v1882
    %v1885 = vunpack.c.l.s4 1934713408
    %v1886 = vunpack.c.0.s8 %v1885
    %v1887 = vperm.slane %v1881, %v1886
    %v1889 = vunpack.c.l.s4 1934713408
    %v1890 = vunpack.c.0.s8 %v1889
    %v1891 = vperm.slane %v1883, %v1890
    %v1892 = vrot.slane %v1855, 4
    %v1893 = vsel %vm117, %v1892, %v1843
    %v1894 = vrot.slane %v1843, 4
    %v1895 = vsel %vm117, %v1855, %v1894
    %v1897 = vunpack.c.l.s4 1934713408
    %v1898 = vunpack.c.0.s8 %v1897
    %v1899 = vperm.slane %v1893, %v1898
    %v1901 = vunpack.c.l.s4 1934713408
    %v1902 = vunpack.c.0.s8 %v1901
    %v1903 = vperm.slane %v1895, %v1902
    %v1904 = vrot.slane %v1887, 4
    %v1905 = vsel %vm117, %v1904, %v1863
    %v1906 = vrot.slane %v1863, 4
    %v1907 = vsel %vm117, %v1887, %v1906
    %v1908 = vrot.slane %v1891, 4
    %v1909 = vsel %vm117, %v1908, %v1867
    %v1910 = vrot.slane %v1867, 4
    %v1911 = vsel %vm117, %v1891, %v1910
    %v1912 = vrot.slane %v1899, 4
    %v1913 = vsel %vm117, %v1912, %v1875
    %v1914 = vrot.slane %v1875, 4
    %v1915 = vsel %vm117, %v1899, %v1914
    %v1916 = vrot.slane %v1903, 4
    %v1917 = vsel %vm117, %v1916, %v1879
    %v1918 = vrot.slane %v1879, 4
    %v1919 = vsel %vm117, %v1903, %v1918
    %v1920 = vrot.slane %v1070, 4
    %v1921 = vsel %vm117, %v1920, %v1044
    %v1922 = vrot.slane %v1044, 4
    %v1923 = vsel %vm117, %v1070, %v1922
    %v1925 = vunpack.c.l.s4 1983009808
    %v1926 = vunpack.c.0.s8 %v1925
    %v1927 = vperm.slane %v1921, %v1926
    %v1929 = vunpack.c.l.s4 1983009808
    %v1930 = vunpack.c.0.s8 %v1929
    %v1931 = vperm.slane %v1923, %v1930
    %v1932 = vrot.slane %v1083, 4
    %v1933 = vsel %vm117, %v1932, %v1057
    %v1934 = vrot.slane %v1057, 4
    %v1935 = vsel %vm117, %v1083, %v1934
    %v1937 = vunpack.c.l.s4 1983009808
    %v1938 = vunpack.c.0.s8 %v1937
    %v1939 = vperm.slane %v1933, %v1938
    %v1941 = vunpack.c.l.s4 1983009808
    %v1942 = vunpack.c.0.s8 %v1941
    %v1943 = vperm.slane %v1935, %v1942
    %v1944 = vrot.slane %v1122, 4
    %v1945 = vsel %vm117, %v1944, %v1096
    %v1946 = vrot.slane %v1096, 4
    %v1947 = vsel %vm117, %v1122, %v1946
    %v1949 = vunpack.c.l.s4 1983009808
    %v1950 = vunpack.c.0.s8 %v1949
    %v1951 = vperm.slane %v1945, %v1950
    %v1953 = vunpack.c.l.s4 1983009808
    %v1954 = vunpack.c.0.s8 %v1953
    %v1955 = vperm.slane %v1947, %v1954
    %v1956 = vrot.slane %v1135, 4
    %v1957 = vsel %vm117, %v1956, %v1109
    %v1958 = vrot.slane %v1109, 4
    %v1959 = vsel %vm117, %v1135, %v1958
    %v1961 = vunpack.c.l.s4 1983009808
    %v1962 = vunpack.c.0.s8 %v1961
    %v1963 = vperm.slane %v1957, %v1962
    %v1965 = vunpack.c.l.s4 1983009808
    %v1966 = vunpack.c.0.s8 %v1965
    %v1967 = vperm.slane %v1959, %v1966
    %v1968 = vrot.slane %v1939, 4
    %v1969 = vsel %vm117, %v1968, %v1927
    %v1970 = vrot.slane %v1927, 4
    %v1971 = vsel %vm117, %v1939, %v1970
    %v1973 = vunpack.c.l.s4 1934713408
    %v1974 = vunpack.c.0.s8 %v1973
    %v1975 = vperm.slane %v1969, %v1974
    %v1977 = vunpack.c.l.s4 1934713408
    %v1978 = vunpack.c.0.s8 %v1977
    %v1979 = vperm.slane %v1971, %v1978
    %v1980 = vrot.slane %v1943, 4
    %v1981 = vsel %vm117, %v1980, %v1931
    %v1982 = vrot.slane %v1931, 4
    %v1983 = vsel %vm117, %v1943, %v1982
    %v1985 = vunpack.c.l.s4 1934713408
    %v1986 = vunpack.c.0.s8 %v1985
    %v1987 = vperm.slane %v1981, %v1986
    %v1989 = vunpack.c.l.s4 1934713408
    %v1990 = vunpack.c.0.s8 %v1989
    %v1991 = vperm.slane %v1983, %v1990
    %v1992 = vrot.slane %v1963, 4
    %v1993 = vsel %vm117, %v1992, %v1951
    %v1994 = vrot.slane %v1951, 4
    %v1995 = vsel %vm117, %v1963, %v1994
    %v1997 = vunpack.c.l.s4 1934713408
    %v1998 = vunpack.c.0.s8 %v1997
    %v1999 = vperm.slane %v1993, %v1998
    %v2001 = vunpack.c.l.s4 1934713408
    %v2002 = vunpack.c.0.s8 %v2001
    %v2003 = vperm.slane %v1995, %v2002
    %v2004 = vrot.slane %v1967, 4
    %v2005 = vsel %vm117, %v2004, %v1955
    %v2006 = vrot.slane %v1955, 4
    %v2007 = vsel %vm117, %v1967, %v2006
    %v2009 = vunpack.c.l.s4 1934713408
    %v2010 = vunpack.c.0.s8 %v2009
    %v2011 = vperm.slane %v2005, %v2010
    %v2013 = vunpack.c.l.s4 1934713408
    %v2014 = vunpack.c.0.s8 %v2013
    %v2015 = vperm.slane %v2007, %v2014
    %v2016 = vrot.slane %v1999, 4
    %v2017 = vsel %vm117, %v2016, %v1975
    %v2018 = vrot.slane %v1975, 4
    %v2019 = vsel %vm117, %v1999, %v2018
    %v2020 = vrot.slane %v2003, 4
    %v2021 = vsel %vm117, %v2020, %v1979
    %v2022 = vrot.slane %v1979, 4
    %v2023 = vsel %vm117, %v2003, %v2022
    %v2024 = vrot.slane %v2011, 4
    %v2025 = vsel %vm117, %v2024, %v1987
    %v2026 = vrot.slane %v1987, 4
    %v2027 = vsel %vm117, %v2011, %v2026
    %v2028 = vrot.slane %v2015, 4
    %v2029 = vsel %vm117, %v2028, %v1991
    %v2030 = vrot.slane %v1991, 4
    %v2031 = vsel %vm117, %v2015, %v2030
    %2036 = vrot.lane.b32.xlu0 %v1235, 16
    %v2037 = vpop.permute.xlu0 %2036
    %2038 = vrot.lane.b32.xlu0 %v1347, 16
    %v2039 = vpop.permute.xlu0 %2038
    %2040 = vrot.lane.b32.xlu0 %v1459, 16
    %v2041 = vpop.permute.xlu0 %2040
    %2042 = vrot.lane.b32.xlu0 %v1571, 16
    %v2043 = vpop.permute.xlu0 %2042
    %2052 = vrot.lane.b32.xlu0 %v1237, 32
    %v2053 = vpop.permute.xlu0 %2052
    %2054 = vrot.lane.b32.xlu0 %v1349, 32
    %v2055 = vpop.permute.xlu0 %2054
    %2056 = vrot.lane.b32.xlu0 %v1461, 32
    %v2057 = vpop.permute.xlu0 %2056
    %2058 = vrot.lane.b32.xlu0 %v1573, 32
    %v2059 = vpop.permute.xlu0 %2058
    %2068 = vrot.lane.b32.xlu0 %v1239, 48
    %v2069 = vpop.permute.xlu0 %2068
    %2070 = vrot.lane.b32.xlu0 %v1351, 48
    %v2071 = vpop.permute.xlu0 %2070
    %2072 = vrot.lane.b32.xlu0 %v1463, 48
    %v2073 = vpop.permute.xlu0 %2072
    %2074 = vrot.lane.b32.xlu0 %v1575, 48
    %v2075 = vpop.permute.xlu0 %2074
    %2084 = vrot.lane.b32.xlu0 %v1241, 64
    %v2085 = vpop.permute.xlu0 %2084
    %2086 = vrot.lane.b32.xlu0 %v1353, 64
    %v2087 = vpop.permute.xlu0 %2086
    %2088 = vrot.lane.b32.xlu0 %v1465, 64
    %v2089 = vpop.permute.xlu0 %2088
    %2090 = vrot.lane.b32.xlu0 %v1577, 64
    %v2091 = vpop.permute.xlu0 %2090
    %2100 = vrot.lane.b32.xlu0 %v1243, 80
    %v2101 = vpop.permute.xlu0 %2100
    %2102 = vrot.lane.b32.xlu0 %v1355, 80
    %v2103 = vpop.permute.xlu0 %2102
    %2104 = vrot.lane.b32.xlu0 %v1467, 80
    %v2105 = vpop.permute.xlu0 %2104
    %2106 = vrot.lane.b32.xlu0 %v1579, 80
    %v2107 = vpop.permute.xlu0 %2106
    %2116 = vrot.lane.b32.xlu0 %v1245, 96
    %v2117 = vpop.permute.xlu0 %2116
    %2118 = vrot.lane.b32.xlu0 %v1357, 96
    %v2119 = vpop.permute.xlu0 %2118
    %2120 = vrot.lane.b32.xlu0 %v1469, 96
    %v2121 = vpop.permute.xlu0 %2120
    %2122 = vrot.lane.b32.xlu0 %v1581, 96
    %v2123 = vpop.permute.xlu0 %2122
    %2132 = vrot.lane.b32.xlu0 %v1247, 112
    %v2133 = vpop.permute.xlu0 %2132
    %2134 = vrot.lane.b32.xlu0 %v1359, 112
    %v2135 = vpop.permute.xlu0 %2134
    %2136 = vrot.lane.b32.xlu0 %v1471, 112
    %v2137 = vpop.permute.xlu0 %2136
    %2138 = vrot.lane.b32.xlu0 %v1583, 112
    %v2139 = vpop.permute.xlu0 %2138
    %2148 = vrot.lane.b32.xlu0 %v1683, 16
    %v2149 = vpop.permute.xlu0 %2148
    %2150 = vrot.lane.b32.xlu0 %v1795, 16
    %v2151 = vpop.permute.xlu0 %2150
    %2152 = vrot.lane.b32.xlu0 %v1907, 16
    %v2153 = vpop.permute.xlu0 %2152
    %2154 = vrot.lane.b32.xlu0 %v2019, 16
    %v2155 = vpop.permute.xlu0 %2154
    %2164 = vrot.lane.b32.xlu0 %v1685, 32
    %v2165 = vpop.permute.xlu0 %2164
    %2166 = vrot.lane.b32.xlu0 %v1797, 32
    %v2167 = vpop.permute.xlu0 %2166
    %2168 = vrot.lane.b32.xlu0 %v1909, 32
    %v2169 = vpop.permute.xlu0 %2168
    %2170 = vrot.lane.b32.xlu0 %v2021, 32
    %v2171 = vpop.permute.xlu0 %2170
    %2180 = vrot.lane.b32.xlu0 %v1687, 48
    %v2181 = vpop.permute.xlu0 %2180
    %2182 = vrot.lane.b32.xlu0 %v1799, 48
    %v2183 = vpop.permute.xlu0 %2182
    %2184 = vrot.lane.b32.xlu0 %v1911, 48
    %v2185 = vpop.permute.xlu0 %2184
    %2186 = vrot.lane.b32.xlu0 %v2023, 48
    %v2187 = vpop.permute.xlu0 %2186
    %2196 = vrot.lane.b32.xlu0 %v1689, 64
    %v2197 = vpop.permute.xlu0 %2196
    %2198 = vrot.lane.b32.xlu0 %v1801, 64
    %v2199 = vpop.permute.xlu0 %2198
    %2200 = vrot.lane.b32.xlu0 %v1913, 64
    %v2201 = vpop.permute.xlu0 %2200
    %2202 = vrot.lane.b32.xlu0 %v2025, 64
    %v2203 = vpop.permute.xlu0 %2202
    %2212 = vrot.lane.b32.xlu0 %v1691, 80
    %v2213 = vpop.permute.xlu0 %2212
    %2214 = vrot.lane.b32.xlu0 %v1803, 80
    %v2215 = vpop.permute.xlu0 %2214
    %2216 = vrot.lane.b32.xlu0 %v1915, 80
    %v2217 = vpop.permute.xlu0 %2216
    %2218 = vrot.lane.b32.xlu0 %v2027, 80
    %v2219 = vpop.permute.xlu0 %2218
    %2228 = vrot.lane.b32.xlu0 %v1693, 96
    %v2229 = vpop.permute.xlu0 %2228
    %2230 = vrot.lane.b32.xlu0 %v1805, 96
    %v2231 = vpop.permute.xlu0 %2230
    %2232 = vrot.lane.b32.xlu0 %v1917, 96
    %v2233 = vpop.permute.xlu0 %2232
    %2234 = vrot.lane.b32.xlu0 %v2029, 96
    %v2235 = vpop.permute.xlu0 %2234
    %2244 = vrot.lane.b32.xlu0 %v1695, 112
    %v2245 = vpop.permute.xlu0 %2244
    %2246 = vrot.lane.b32.xlu0 %v1807, 112
    %v2247 = vpop.permute.xlu0 %2246
    %2248 = vrot.lane.b32.xlu0 %v1919, 112
    %v2249 = vpop.permute.xlu0 %2248
    %2250 = vrot.lane.b32.xlu0 %v2031, 112
    %v2251 = vpop.permute.xlu0 %2250
    %v2256 = vsel %vm677, %v1233, %v2037
    %v2257 = vsel %vm677, %v1345, %v2039
    %v2258 = vsel %vm677, %v1457, %v2041
    %v2259 = vsel %vm677, %v1569, %v2043
    %v2260 = vsel %vm682, %v2256, %v2053
    %v2261 = vsel %vm682, %v2257, %v2055
    %v2262 = vsel %vm682, %v2258, %v2057
    %v2263 = vsel %vm682, %v2259, %v2059
    %v2264 = vsel %vm687, %v2260, %v2069
    %v2265 = vsel %vm687, %v2261, %v2071
    %v2266 = vsel %vm687, %v2262, %v2073
    %v2267 = vsel %vm687, %v2263, %v2075
    %v2268 = vsel %vm692, %v2264, %v2085
    %v2269 = vsel %vm692, %v2265, %v2087
    %v2270 = vsel %vm692, %v2266, %v2089
    %v2271 = vsel %vm692, %v2267, %v2091
    %v2272 = vsel %vm697, %v2268, %v2101
    %v2273 = vsel %vm697, %v2269, %v2103
    %v2274 = vsel %vm697, %v2270, %v2105
    %v2275 = vsel %vm697, %v2271, %v2107
    %v2276 = vsel %vm702, %v2272, %v2117
    %v2277 = vsel %vm702, %v2273, %v2119
    %v2278 = vsel %vm702, %v2274, %v2121
    %v2279 = vsel %vm702, %v2275, %v2123
    %v2280 = vsel %vm707, %v2276, %v2133
    %v2281 = vsel %vm707, %v2277, %v2135
    %v2282 = vsel %vm707, %v2278, %v2137
    %v2283 = vsel %vm707, %v2279, %v2139
    %v2284 = vsel %vm677, %v1681, %v2149
    %v2285 = vsel %vm677, %v1793, %v2151
    %v2286 = vsel %vm677, %v1905, %v2153
    %v2287 = vsel %vm677, %v2017, %v2155
    %v2288 = vsel %vm682, %v2284, %v2165
    %v2289 = vsel %vm682, %v2285, %v2167
    %v2290 = vsel %vm682, %v2286, %v2169
    %v2291 = vsel %vm682, %v2287, %v2171
    %v2292 = vsel %vm687, %v2288, %v2181
    %v2293 = vsel %vm687, %v2289, %v2183
    %v2294 = vsel %vm687, %v2290, %v2185
    %v2295 = vsel %vm687, %v2291, %v2187
    %v2296 = vsel %vm692, %v2292, %v2197
    %v2297 = vsel %vm692, %v2293, %v2199
    %v2298 = vsel %vm692, %v2294, %v2201
    %v2299 = vsel %vm692, %v2295, %v2203
    %v2300 = vsel %vm697, %v2296, %v2213
    %v2301 = vsel %vm697, %v2297, %v2215
    %v2302 = vsel %vm697, %v2298, %v2217
    %v2303 = vsel %vm697, %v2299, %v2219
    %v2304 = vsel %vm702, %v2300, %v2229
    %v2305 = vsel %vm702, %v2301, %v2231
    %v2306 = vsel %vm702, %v2302, %v2233
    %v2307 = vsel %vm702, %v2303, %v2235
    %v2308 = vsel %vm707, %v2304, %v2245
    %v2309 = vsel %vm707, %v2305, %v2247
    %v2310 = vsel %vm707, %v2306, %v2249
    %v2311 = vsel %vm707, %v2307, %v2251
    %2312 = vst [vmem:[#allocation2 + $0x40] sm:$0xff] %v2280
    %2313 = vst [vmem:[#allocation2 + $0x48] sm:$0xff] %v2308
    %2314 = vst [vmem:[#allocation2 + $0x50] sm:$0xff] %v2281
    %2315 = vst [vmem:[#allocation2 + $0x58] sm:$0xff] %v2309
    %2316 = vst [vmem:[#allocation2 + $0x60] sm:$0xff] %v2282
    %2317 = vst [vmem:[#allocation2 + $0x68] sm:$0xff] %v2310
    %2318 = vst [vmem:[#allocation2 + $0x70] sm:$0xff] %v2283
    %2319 = vst [vmem:[#allocation2 + $0x78] sm:$0xff] %v2311
    // Predicated region
    $region10: #{tpu_custom_call.1} parent=1 // pred_check
      _
    $region11: #{tpu_custom_call.1} parent=1 // pred_check_branch
      %2321 = sbr.rel (0) target = $region13
    $region12: #{tpu_custom_call.1} parent=1 // pred_region
      %2323 = vsyncadd [#allocation3], 0
      %s2324 = sshll.u32 [#allocation2], 4
      %s2325 = int_to_ptr.vmem [resolvable:$true] %s2324
      %s2326 = sshll.u32 %s2, 4
      %s2327 = int_to_ptr.hbm [resolvable:$true] %s2326
      %2332 = dma.vmem_to_hbm [thread:$0]  %s2325, 2048, %s2327, [#allocation3], 256, 256, 16
    $region13: #{tpu_custom_call.1} parent=1 // pred_fallthru
      _
    // Predicated region
    $region14: #{tpu_custom_call.1} parent=1 // pred_check
      _
    $region15: #{tpu_custom_call.1} parent=1 // pred_check_branch
      %2334 = sbr.rel (0) target = $region17
    $region16: #{tpu_custom_call.1} parent=1 // pred_region
      %2336 = dma.done [#allocation3], 2048
    $region17: #{tpu_custom_call.1} parent=1 // pred_fallthru
      _
    %2337 = vsyncpa [#allocation3], 1

</llo_original>
